<compile_context>
chip_gen: v7x
topology: tpu7x:2x2x1
jax: 0.10.0
libtpu: 0.0.40
codegen_flags: <defaults>
</compile_context>

<pallas_src>
import functools

import jax
import jax.numpy as jnp
from jax.experimental import pallas as pl
from jax.experimental.pallas import tpu as pltpu


def conv2d_output_shape(h, w, kernel_size=1, stride=1, padding=0, dilation=1):
    kh, kw = kernel_size if isinstance(kernel_size, tuple) else (kernel_size,) * 2
    sh, sw = stride if isinstance(stride, tuple) else (stride,) * 2
    ph, pw = padding if isinstance(padding, tuple) else (padding,) * 2
    d = dilation
    h = (h + 2 * ph - d * (kh - 1) - 1) // sh + 1
    w = (w + 2 * pw - d * (kw - 1) - 1) // sw + 1
    return (h, w)


def _pick_batch_tile(batch, max_tile=8):
    """Largest divisor of `batch` that still leaves >= 2 grid steps (both v7x
    TensorCores busy) while amortizing the ~0.35us per-grid-step overhead."""
    target = max(1, min(max_tile, batch // 2))
    for bt in range(target, 0, -1):
        if batch % bt == 0:
            return bt
    return 1


def _ds(start, size, stride):
    """Slice helper; avoids stride=1 strided slices."""
    return pl.ds(start, size) if stride == 1 else pl.ds(start, size, stride=stride)


# ---------------------------------------------------------------------------
# Fused Pallas kernel: Conv(k1,s1,p1)+ReLU -> Conv(k2,s2,p2)+ReLU
# ---------------------------------------------------------------------------
def _fused_conv2d_relu_x2(x_nhwc, w1m, b1m, w2m, b2m, *,
                          kernel_sizes, strides, paddings, batch_tile):
    """x_nhwc : [B, H, W, Cin]  (unpadded, channels last)
       w1m    : [K1*K1*Cin, C1] ((kh, kw, cin) row order), b1m: [1, C1]
       w2m    : [K2*K2*C1, C2],                            b2m: [1, C2]
       returns [B, Ho2, Wo2, C2] f32
    """
    B, H, W, Cin = x_nhwc.shape
    K1, K2 = kernel_sizes
    s1, s2 = strides
    p1, p2 = paddings
    C1, C2 = w1m.shape[1], w2m.shape[1]
    Ho1, Wo1 = conv2d_output_shape(H, W, K1, s1, p1)
    Ho2, Wo2 = conv2d_output_shape(Ho1, Wo1, K2, s2, p2)
    Hp1, Wp1 = H + 2 * p1, W + 2 * p1          # padded input (VMEM scratch)
    Hp2, Wp2 = Ho1 + 2 * p2, Wo1 + 2 * p2      # padded layer-1 act (VMEM scratch)
    bt = batch_tile
    assert B % bt == 0

    def _im2col(ref, k, s, ho, wo, cin):
        # One 2-D strided slice per (kh, kw) tap over the whole batch tile
        # (H and W both strided by s; channel lanes dense), lane-concat the
        # k*k taps, then collapse the leading dims for the single MXU dot.
        taps = []
        for kh in range(k):
            for kw in range(k):
                taps.append(ref[:, _ds(kh, ho, s), _ds(kw, wo, s), :])
        cols = jnp.concatenate(taps, axis=-1)          # (bt, ho, wo, k*k*cin)
        return cols.reshape(bt * ho * wo, k * k * cin)

    def kernel(x_ref, w1_ref, b1_ref, w2_ref, b2_ref, o_ref, xp_ref, a1p_ref):
        # Zero the padded scratches (cheap; keeps the padding ring valid on
        # every core regardless of megacore grid sharding).
        xp_ref[...] = jnp.zeros(xp_ref.shape, xp_ref.dtype)
        a1p_ref[...] = jnp.zeros(a1p_ref.shape, a1p_ref.dtype)

        # In-kernel zero padding: one contiguous interior store.
        xp_ref[:, pl.ds(p1, H), pl.ds(p1, W), :] = x_ref[...]

        # ---- Layer 1: Conv(K1, s1, p1) + ReLU — one im2col + one MXU dot ----
        cols1 = _im2col(xp_ref, K1, s1, Ho1, Wo1, Cin)       # (bt*Ho1*Wo1, K1*K1*Cin)
        a1 = jnp.dot(cols1, w1_ref[...], preferred_element_type=jnp.float32)
        a1 = jnp.maximum(a1 + b1_ref[...], 0.0)              # (bt*Ho1*Wo1, C1) f32
        # Store into the padded scratch interior; ring stays zero.
        a1p_ref[:, pl.ds(p2, Ho1), pl.ds(p2, Wo1), :] = a1.reshape(bt, Ho1, Wo1, C1)

        # ---- Layer 2: Conv(K2, s2, p2) + ReLU — one im2col + one MXU dot ----
        cols2 = _im2col(a1p_ref, K2, s2, Ho2, Wo2, C1)       # (bt*Ho2*Wo2, K2*K2*C1)
        a2 = jnp.dot(cols2, w2_ref[...], preferred_element_type=jnp.float32)
        a2 = jnp.maximum(a2 + b2_ref[...], 0.0)              # (bt*Ho2*Wo2, C2)

        # Single whole-block store per grid step.
        o_ref[...] = a2.reshape(bt, Ho2 * Wo2, C2)

    out_flat = pl.pallas_call(
        kernel,
        out_shape=jax.ShapeDtypeStruct((B, Ho2 * Wo2, C2), jnp.float32),
        grid=(B // bt,),
        in_specs=[
            pl.BlockSpec((bt, H, W, Cin), lambda g: (g, 0, 0, 0)),
            # Weights/biases: constant index maps -> resident across grid steps.
            pl.BlockSpec((K1 * K1 * Cin, C1), lambda g: (0, 0)),
            pl.BlockSpec((1, C1), lambda g: (0, 0)),
            pl.BlockSpec((K2 * K2 * C1, C2), lambda g: (0, 0)),
            pl.BlockSpec((1, C2), lambda g: (0, 0)),
        ],
        out_specs=pl.BlockSpec((bt, Ho2 * Wo2, C2), lambda g: (g, 0, 0)),
        scratch_shapes=[
            pltpu.VMEM((bt, Hp1, Wp1, Cin), jnp.float32),    # padded input
            pltpu.VMEM((bt, Hp2, Wp2, C1), jnp.float32),     # padded layer-1 act
        ],
        compiler_params=pltpu.CompilerParams(
            dimension_semantics=("parallel",),   # megacore-shard over batch tiles
        ),
    )(x_nhwc, w1m, b1m, w2m, b2m)

    return out_flat.reshape(B, Ho2, Wo2, C2)


# ---------------------------------------------------------------------------
# Conv2dModel equivalent
# ---------------------------------------------------------------------------
def init_conv2d_model_params(key, in_channels, channels, kernel_sizes):
    """Deterministic synthetic parameters with nn.Conv2d shapes."""
    params = []
    ics = [in_channels] + list(channels[:-1])
    for ic, oc, k in zip(ics, channels, kernel_sizes):
        key, wk, bk = jax.random.split(key, 3)
        fan_in = ic * k * k
        w = jax.random.normal(wk, (oc, ic, k, k), jnp.float32) * (1.0 / fan_in) ** 0.5
        b = jax.random.normal(bk, (oc,), jnp.float32) * 0.01
        params.append((w, b))
    return params


@functools.partial(jax.jit, static_argnames=("strides", "paddings"))
def conv2d_model_forward(x_nchw, params, *, strides, paddings):
    """Forward pass of Conv2dModel: [B,C,H,W] -> [B,C_out,H_out,W_out].

    use_maxpool=False, nonlinearity=ReLU (module defaults); two conv layers.
    Everything runs in f32 (keep f32 on v5e; if channel counts are scaled up,
    pad Cout toward multiples of 128 in the weight layout for the MXU/lanes).
    """
    (w1, b1), (w2, b2) = params
    B, Cin, H, W = x_nchw.shape
    C1, K1 = w1.shape[0], w1.shape[2]
    C2, K2 = w2.shape[0], w2.shape[2]
    s1, s2 = strides
    p1, p2 = paddings

    # NCHW -> NHWC (channels on the lane axis).  This is the only wrapper-side
    # data movement: padding, im2col and the inter-layer activation all stay
    # inside the kernel / VMEM.
    x = jnp.transpose(x_nchw, (0, 2, 3, 1))

    # nn.Conv2d weight [Cout, Cin, kh, kw] -> [(kh, kw, cin), cout] so tap
    # (kh, kw)'s lane block in the im2col matrix matches weight rows.
    w1m = jnp.transpose(w1, (2, 3, 1, 0)).reshape(K1 * K1 * Cin, C1)
    w2m = jnp.transpose(w2, (2, 3, 1, 0)).reshape(K2 * K2 * C1, C2)
    b1m = b1.reshape(1, C1).astype(jnp.float32)
    b2m = b2.reshape(1, C2).astype(jnp.float32)

    out_nhwc = _fused_conv2d_relu_x2(
        x, w1m, b1m, w2m, b2m,
        kernel_sizes=(K1, K2), strides=(s1, s2), paddings=(p1, p2),
        batch_tile=_pick_batch_tile(B))

    # NHWC -> NCHW to match PyTorch output convention (tiny: B x 16 x 4 x 4).
    return jnp.transpose(out_nhwc, (0, 3, 1, 2))


# Pure-JAX reference (lax conv) for correctness checking.
def _reference_forward(x_nchw, params, strides, paddings):
    x = jnp.transpose(x_nchw, (0, 2, 3, 1))
    for (w, b), s, p in zip(params, strides, paddings):
        w_hwio = jnp.transpose(w, (2, 3, 1, 0))
        x = jax.lax.conv_general_dilated(
            x, w_hwio, window_strides=(s, s), padding=[(p, p), (p, p)],
            dimension_numbers=("NHWC", "HWIO", "NHWC"),
        ) + b.reshape(1, 1, 1, -1)
        x = jnp.maximum(x, 0.0)
    return jnp.transpose(x, (0, 3, 1, 2))


if __name__ == "__main__":
    # Model config (Conv2dModel(in_channels=4, channels=[8,16], kernel_sizes=[3,3],
    #                           strides=[2,2], paddings=[1,1]))
    in_channels = 4
    channels = [8, 16]
    kernel_sizes = [3, 3]
    strides = (2, 2)
    paddings = (1, 1)
    # use_maxpool=False, nonlinearity=ReLU (defaults) — no MaxPool2d layers.

    key = jax.random.PRNGKey(0)
    key, xk = jax.random.split(key)
    x = jax.random.normal(xk, (2, 4, 16, 16), jnp.float32)   # [B, C, H, W]

    params = init_conv2d_model_params(key, in_channels, channels, kernel_sizes)

    out = conv2d_model_forward(x, params, strides=strides, paddings=paddings)
    out = jax.block_until_ready(out)

    # Shape check: matches Conv2dModel.conv_out_size logic.
    h, w = 16, 16
    for k_, s_, p_ in zip(kernel_sizes, strides, paddings):
        h, w = conv2d_output_shape(h, w, k_, s_, p_)
    assert out.shape == (2, channels[-1], h, w), out.shape

    # Value check against the lax reference.
    ref = _reference_forward(x, params, strides, paddings)
    err = float(jnp.max(jnp.abs(out - ref)))
    assert err < 1e-4, err

    print("KERNEL_OK")
</pallas_src>

<mosaic_0001>
module attributes {stable_mosaic.version = 11 : i64} {
  func.func @kernel(%arg0: i32, %arg1: memref<1x16x16x4xf32, #tpu.memory_space<vmem>>, %arg2: memref<36x8xf32, #tpu.memory_space<vmem>>, %arg3: memref<1x8xf32, #tpu.memory_space<vmem>>, %arg4: memref<72x16xf32, #tpu.memory_space<vmem>>, %arg5: memref<1x16xf32, #tpu.memory_space<vmem>>, %arg6: memref<1x16x16xf32, #tpu.memory_space<vmem>>, %arg7: memref<1x18x18x4xf32, #tpu.memory_space<vmem>>, %arg8: memref<1x10x10x8xf32, #tpu.memory_space<vmem>>) attributes {dimension_semantics = [#tpu.dimension_semantics<parallel>], iteration_bounds = array<i64: 2>, scalar_prefetch = 0 : i64, scratch_operands = 2 : i64, tpu.core_type = #tpu.core_type<tc>, window_params = [{transform_indices = @transform_0, window_bounds = array<i64: 1, 16, 16, 4>}, {pipeline_mode = #tpu.pipeline_mode<synchronous>, transform_indices = @transform_1, window_bounds = array<i64: 36, 8>}, {pipeline_mode = #tpu.pipeline_mode<synchronous>, transform_indices = @transform_2, window_bounds = array<i64: 1, 8>}, {pipeline_mode = #tpu.pipeline_mode<synchronous>, transform_indices = @transform_3, window_bounds = array<i64: 72, 16>}, {pipeline_mode = #tpu.pipeline_mode<synchronous>, transform_indices = @transform_4, window_bounds = array<i64: 1, 16>}, {transform_indices = @transform_5, window_bounds = array<i64: 1, 16, 16>}]} {
    %cst = arith.constant 0.000000e+00 : f32
    %0 = vector.broadcast %cst : f32 to vector<1x18x18x4xf32>
    %c0 = arith.constant 0 : index
    %c0_0 = arith.constant 0 : index
    %c0_1 = arith.constant 0 : index
    %c0_2 = arith.constant 0 : index
    %1 = vector.load %arg7[%c0, %c0_0, %c0_1, %c0_2] : memref<1x18x18x4xf32, #tpu.memory_space<vmem>>, vector<1x18x18x4xf32>
    tpu.vector_store %arg7[%c0, %c0_0, %c0_1, %c0_2], %0 {strides = array<i32>} : memref<1x18x18x4xf32, #tpu.memory_space<vmem>>, vector<1x18x18x4xf32>,
    %cst_3 = arith.constant 0.000000e+00 : f32
    %2 = vector.broadcast %cst_3 : f32 to vector<1x10x10x8xf32>
    %c0_4 = arith.constant 0 : index
    %c0_5 = arith.constant 0 : index
    %c0_6 = arith.constant 0 : index
    %c0_7 = arith.constant 0 : index
    %3 = vector.load %arg8[%c0_4, %c0_5, %c0_6, %c0_7] : memref<1x10x10x8xf32, #tpu.memory_space<vmem>>, vector<1x10x10x8xf32>
    tpu.vector_store %arg8[%c0_4, %c0_5, %c0_6, %c0_7], %2 {strides = array<i32>} : memref<1x10x10x8xf32, #tpu.memory_space<vmem>>, vector<1x10x10x8xf32>,
    %c0_8 = arith.constant 0 : index
    %c0_9 = arith.constant 0 : index
    %c0_10 = arith.constant 0 : index
    %c0_11 = arith.constant 0 : index
    %4 = vector.load %arg1[%c0_8, %c0_9, %c0_10, %c0_11] : memref<1x16x16x4xf32, #tpu.memory_space<vmem>>, vector<1x16x16x4xf32>
    %c0_12 = arith.constant 0 : index
    %c1 = arith.constant 1 : index
    %c1_13 = arith.constant 1 : index
    %c0_14 = arith.constant 0 : index
    %5 = vector.load %arg7[%c0_12, %c1, %c1_13, %c0_14] : memref<1x18x18x4xf32, #tpu.memory_space<vmem>>, vector<1x16x16x4xf32>
    tpu.vector_store %arg7[%c0_12, %c1, %c1_13, %c0_14], %4 {strides = array<i32>} : memref<1x18x18x4xf32, #tpu.memory_space<vmem>>, vector<1x16x16x4xf32>,
    %c0_15 = arith.constant 0 : index
    %c0_16 = arith.constant 0 : index
    %c0_17 = arith.constant 0 : index
    %c0_18 = arith.constant 0 : index
    %6 = tpu.strided_load %arg7[%c0_15, %c0_16, %c0_17, %c0_18] {strides = array<i32: 1, 2, 2, 1>} : memref<1x18x18x4xf32, #tpu.memory_space<vmem>>, vector<1x8x8x4xf32>
    %c0_19 = arith.constant 0 : index
    %c0_20 = arith.constant 0 : index
    %c1_21 = arith.constant 1 : index
    %c0_22 = arith.constant 0 : index
    %7 = tpu.strided_load %arg7[%c0_19, %c0_20, %c1_21, %c0_22] {strides = array<i32: 1, 2, 2, 1>} : memref<1x18x18x4xf32, #tpu.memory_space<vmem>>, vector<1x8x8x4xf32>
    %c0_23 = arith.constant 0 : index
    %c0_24 = arith.constant 0 : index
    %c2 = arith.constant 2 : index
    %c0_25 = arith.constant 0 : index
    %8 = tpu.strided_load %arg7[%c0_23, %c0_24, %c2, %c0_25] {strides = array<i32: 1, 2, 2, 1>} : memref<1x18x18x4xf32, #tpu.memory_space<vmem>>, vector<1x8x8x4xf32>
    %c0_26 = arith.constant 0 : index
    %c1_27 = arith.constant 1 : index
    %c0_28 = arith.constant 0 : index
    %c0_29 = arith.constant 0 : index
    %9 = tpu.strided_load %arg7[%c0_26, %c1_27, %c0_28, %c0_29] {strides = array<i32: 1, 2, 2, 1>} : memref<1x18x18x4xf32, #tpu.memory_space<vmem>>, vector<1x8x8x4xf32>
    %c0_30 = arith.constant 0 : index
    %c1_31 = arith.constant 1 : index
    %c1_32 = arith.constant 1 : index
    %c0_33 = arith.constant 0 : index
    %10 = tpu.strided_load %arg7[%c0_30, %c1_31, %c1_32, %c0_33] {strides = array<i32: 1, 2, 2, 1>} : memref<1x18x18x4xf32, #tpu.memory_space<vmem>>, vector<1x8x8x4xf32>
    %c0_34 = arith.constant 0 : index
    %c1_35 = arith.constant 1 : index
    %c2_36 = arith.constant 2 : index
    %c0_37 = arith.constant 0 : index
    %11 = tpu.strided_load %arg7[%c0_34, %c1_35, %c2_36, %c0_37] {strides = array<i32: 1, 2, 2, 1>} : memref<1x18x18x4xf32, #tpu.memory_space<vmem>>, vector<1x8x8x4xf32>
    %c0_38 = arith.constant 0 : index
    %c2_39 = arith.constant 2 : index
    %c0_40 = arith.constant 0 : index
    %c0_41 = arith.constant 0 : index
    %12 = tpu.strided_load %arg7[%c0_38, %c2_39, %c0_40, %c0_41] {strides = array<i32: 1, 2, 2, 1>} : memref<1x18x18x4xf32, #tpu.memory_space<vmem>>, vector<1x8x8x4xf32>
    %c0_42 = arith.constant 0 : index
    %c2_43 = arith.constant 2 : index
    %c1_44 = arith.constant 1 : index
    %c0_45 = arith.constant 0 : index
    %13 = tpu.strided_load %arg7[%c0_42, %c2_43, %c1_44, %c0_45] {strides = array<i32: 1, 2, 2, 1>} : memref<1x18x18x4xf32, #tpu.memory_space<vmem>>, vector<1x8x8x4xf32>
    %c0_46 = arith.constant 0 : index
    %c2_47 = arith.constant 2 : index
    %c2_48 = arith.constant 2 : index
    %c0_49 = arith.constant 0 : index
    %14 = tpu.strided_load %arg7[%c0_46, %c2_47, %c2_48, %c0_49] {strides = array<i32: 1, 2, 2, 1>} : memref<1x18x18x4xf32, #tpu.memory_space<vmem>>, vector<1x8x8x4xf32>
    %15 = tpu.concatenate %6, %7, %8, %9, %10, %11, %12, %13, %14 in 3 : vector<1x8x8x4xf32>, vector<1x8x8x4xf32>, vector<1x8x8x4xf32>, vector<1x8x8x4xf32>, vector<1x8x8x4xf32>, vector<1x8x8x4xf32>, vector<1x8x8x4xf32>, vector<1x8x8x4xf32>, vector<1x8x8x4xf32> -> vector<1x8x8x36xf32>
    %16 = vector.shape_cast %15 : vector<1x8x8x36xf32> to vector<64x36xf32>
    %c0_50 = arith.constant 0 : index
    %c0_51 = arith.constant 0 : index
    %17 = vector.load %arg2[%c0_50, %c0_51] : memref<36x8xf32, #tpu.memory_space<vmem>>, vector<36x8xf32>
    %cst_52 = arith.constant dense<0.000000e+00> : vector<64x8xf32>
    %18 = tpu.matmul %16, %17, %cst_52 {dimension_numbers = #tpu.dot_dimension_numbers<[1], [0], [0], [1], [0, 0, 1, 1], [], []>} : vector<64x36xf32>, vector<36x8xf32>, vector<64x8xf32> -> vector<64x8xf32>
    %c0_53 = arith.constant 0 : index
    %c0_54 = arith.constant 0 : index
    %19 = vector.load %arg3[%c0_53, %c0_54] : memref<1x8xf32, #tpu.memory_space<vmem>>, vector<1x8xf32>
    %20 = vector.broadcast %19 : vector<1x8xf32> to vector<64x8xf32>
    %21 = arith.addf %18, %20 : vector<64x8xf32>
    %cst_55 = arith.constant 0.000000e+00 : f32
    %22 = vector.broadcast %cst_55 : f32 to vector<64x8xf32>
    %23 = arith.maximumf %21, %22 : vector<64x8xf32>
    %24 = vector.shape_cast %23 : vector<64x8xf32> to vector<1x8x8x8xf32>
    %c0_56 = arith.constant 0 : index
    %c1_57 = arith.constant 1 : index
    %c1_58 = arith.constant 1 : index
    %c0_59 = arith.constant 0 : index
    %25 = vector.load %arg8[%c0_56, %c1_57, %c1_58, %c0_59] : memref<1x10x10x8xf32, #tpu.memory_space<vmem>>, vector<1x8x8x8xf32>
    tpu.vector_store %arg8[%c0_56, %c1_57, %c1_58, %c0_59], %24 {strides = array<i32>} : memref<1x10x10x8xf32, #tpu.memory_space<vmem>>, vector<1x8x8x8xf32>,
    %c0_60 = arith.constant 0 : index
    %c0_61 = arith.constant 0 : index
    %c0_62 = arith.constant 0 : index
    %c0_63 = arith.constant 0 : index
    %26 = tpu.strided_load %arg8[%c0_60, %c0_61, %c0_62, %c0_63] {strides = array<i32: 1, 2, 2, 1>} : memref<1x10x10x8xf32, #tpu.memory_space<vmem>>, vector<1x4x4x8xf32>
    %c0_64 = arith.constant 0 : index
    %c0_65 = arith.constant 0 : index
    %c1_66 = arith.constant 1 : index
    %c0_67 = arith.constant 0 : index
    %27 = tpu.strided_load %arg8[%c0_64, %c0_65, %c1_66, %c0_67] {strides = array<i32: 1, 2, 2, 1>} : memref<1x10x10x8xf32, #tpu.memory_space<vmem>>, vector<1x4x4x8xf32>
    %c0_68 = arith.constant 0 : index
    %c0_69 = arith.constant 0 : index
    %c2_70 = arith.constant 2 : index
    %c0_71 = arith.constant 0 : index
    %28 = tpu.strided_load %arg8[%c0_68, %c0_69, %c2_70, %c0_71] {strides = array<i32: 1, 2, 2, 1>} : memref<1x10x10x8xf32, #tpu.memory_space<vmem>>, vector<1x4x4x8xf32>
    %c0_72 = arith.constant 0 : index
    %c1_73 = arith.constant 1 : index
    %c0_74 = arith.constant 0 : index
    %c0_75 = arith.constant 0 : index
    %29 = tpu.strided_load %arg8[%c0_72, %c1_73, %c0_74, %c0_75] {strides = array<i32: 1, 2, 2, 1>} : memref<1x10x10x8xf32, #tpu.memory_space<vmem>>, vector<1x4x4x8xf32>
    %c0_76 = arith.constant 0 : index
    %c1_77 = arith.constant 1 : index
    %c1_78 = arith.constant 1 : index
    %c0_79 = arith.constant 0 : index
    %30 = tpu.strided_load %arg8[%c0_76, %c1_77, %c1_78, %c0_79] {strides = array<i32: 1, 2, 2, 1>} : memref<1x10x10x8xf32, #tpu.memory_space<vmem>>, vector<1x4x4x8xf32>
    %c0_80 = arith.constant 0 : index
    %c1_81 = arith.constant 1 : index
    %c2_82 = arith.constant 2 : index
    %c0_83 = arith.constant 0 : index
    %31 = tpu.strided_load %arg8[%c0_80, %c1_81, %c2_82, %c0_83] {strides = array<i32: 1, 2, 2, 1>} : memref<1x10x10x8xf32, #tpu.memory_space<vmem>>, vector<1x4x4x8xf32>
    %c0_84 = arith.constant 0 : index
    %c2_85 = arith.constant 2 : index
    %c0_86 = arith.constant 0 : index
    %c0_87 = arith.constant 0 : index
    %32 = tpu.strided_load %arg8[%c0_84, %c2_85, %c0_86, %c0_87] {strides = array<i32: 1, 2, 2, 1>} : memref<1x10x10x8xf32, #tpu.memory_space<vmem>>, vector<1x4x4x8xf32>
    %c0_88 = arith.constant 0 : index
    %c2_89 = arith.constant 2 : index
    %c1_90 = arith.constant 1 : index
    %c0_91 = arith.constant 0 : index
    %33 = tpu.strided_load %arg8[%c0_88, %c2_89, %c1_90, %c0_91] {strides = array<i32: 1, 2, 2, 1>} : memref<1x10x10x8xf32, #tpu.memory_space<vmem>>, vector<1x4x4x8xf32>
    %c0_92 = arith.constant 0 : index
    %c2_93 = arith.constant 2 : index
    %c2_94 = arith.constant 2 : index
    %c0_95 = arith.constant 0 : index
    %34 = tpu.strided_load %arg8[%c0_92, %c2_93, %c2_94, %c0_95] {strides = array<i32: 1, 2, 2, 1>} : memref<1x10x10x8xf32, #tpu.memory_space<vmem>>, vector<1x4x4x8xf32>
    %35 = tpu.concatenate %26, %27, %28, %29, %30, %31, %32, %33, %34 in 3 : vector<1x4x4x8xf32>, vector<1x4x4x8xf32>, vector<1x4x4x8xf32>, vector<1x4x4x8xf32>, vector<1x4x4x8xf32>, vector<1x4x4x8xf32>, vector<1x4x4x8xf32>, vector<1x4x4x8xf32>, vector<1x4x4x8xf32> -> vector<1x4x4x72xf32>
    %36 = vector.shape_cast %35 : vector<1x4x4x72xf32> to vector<16x72xf32>
    %c0_96 = arith.constant 0 : index
    %c0_97 = arith.constant 0 : index
    %37 = vector.load %arg4[%c0_96, %c0_97] : memref<72x16xf32, #tpu.memory_space<vmem>>, vector<72x16xf32>
    %cst_98 = arith.constant dense<0.000000e+00> : vector<16x16xf32>
    %38 = tpu.matmul %36, %37, %cst_98 {dimension_numbers = #tpu.dot_dimension_numbers<[1], [0], [0], [1], [0, 0, 1, 1], [], []>} : vector<16x72xf32>, vector<72x16xf32>, vector<16x16xf32> -> vector<16x16xf32>
    %c0_99 = arith.constant 0 : index
    %c0_100 = arith.constant 0 : index
    %39 = vector.load %arg5[%c0_99, %c0_100] : memref<1x16xf32, #tpu.memory_space<vmem>>, vector<1x16xf32>
    %40 = vector.broadcast %39 : vector<1x16xf32> to vector<16x16xf32>
    %41 = arith.addf %38, %40 : vector<16x16xf32>
    %cst_101 = arith.constant 0.000000e+00 : f32
    %42 = vector.broadcast %cst_101 : f32 to vector<16x16xf32>
    %43 = arith.maximumf %41, %42 : vector<16x16xf32>
    %44 = vector.shape_cast %43 : vector<16x16xf32> to vector<1x16x16xf32>
    %c0_102 = arith.constant 0 : index
    %c0_103 = arith.constant 0 : index
    %c0_104 = arith.constant 0 : index
    %45 = vector.load %arg6[%c0_102, %c0_103, %c0_104] : memref<1x16x16xf32, #tpu.memory_space<vmem>>, vector<1x16x16xf32>
    tpu.vector_store %arg6[%c0_102, %c0_103, %c0_104], %44 {strides = array<i32>} : memref<1x16x16xf32, #tpu.memory_space<vmem>>, vector<1x16x16xf32>,
    return
  }
  func.func @transform_0(%arg0: i32) -> (i32, i32, i32, i32) {
    %c0_i32 = arith.constant 0 : i32
    %c0_i32_0 = arith.constant 0 : i32
    %c0_i32_1 = arith.constant 0 : i32
    %c0_i32_2 = arith.constant 0 : i32
    return %arg0, %c0_i32, %c0_i32_0, %c0_i32_1 : i32, i32, i32, i32
  }
  func.func @transform_1(%arg0: i32) -> (i32, i32) {
    %c0_i32 = arith.constant 0 : i32
    %c0_i32_0 = arith.constant 0 : i32
    %c0_i32_1 = arith.constant 0 : i32
    return %c0_i32, %c0_i32_0 : i32, i32
  }
  func.func @transform_2(%arg0: i32) -> (i32, i32) {
    %c0_i32 = arith.constant 0 : i32
    %c0_i32_0 = arith.constant 0 : i32
    %c0_i32_1 = arith.constant 0 : i32
    return %c0_i32, %c0_i32_0 : i32, i32
  }
  func.func @transform_3(%arg0: i32) -> (i32, i32) {
    %c0_i32 = arith.constant 0 : i32
    %c0_i32_0 = arith.constant 0 : i32
    %c0_i32_1 = arith.constant 0 : i32
    return %c0_i32, %c0_i32_0 : i32, i32
  }
  func.func @transform_4(%arg0: i32) -> (i32, i32) {
    %c0_i32 = arith.constant 0 : i32
    %c0_i32_0 = arith.constant 0 : i32
    %c0_i32_1 = arith.constant 0 : i32
    return %c0_i32, %c0_i32_0 : i32, i32
  }
  func.func @transform_5(%arg0: i32) -> (i32, i32, i32) {
    %c0_i32 = arith.constant 0 : i32
    %c0_i32_0 = arith.constant 0 : i32
    %c0_i32_1 = arith.constant 0 : i32
    return %arg0, %c0_i32, %c0_i32_0 : i32, i32, i32
  }
}

</mosaic_0001>

<llo_original>
// kernel: conv2d_model_forward.1
$region0: #{conv2d_model_forward.1}
  #allocation0 [shape = 'u32[]', space=smem, size = 0x4, offset = 0x4, fixed_abs, tag = 'smem constant byte address 0x4 - core index']
  #allocation1 [shape = 'u32[144,128]{1,0:T(1,128)}', space=vmem, size = 0x12000, scoped, tag = 'internal scratch']
  #allocation2 [shape = 'f32[1,18,18,4]{3,2,1,0:T(8,128)}', space=vmem, size = 0x36000, scoped, tag = 'scratch operand']
  #allocation3 [shape = 'f32[1,10,10,8]{3,2,1,0:T(8,128)}', space=vmem, size = 0x14000, scoped, tag = 'scratch operand']
  %s0 = inlined_call_operand.vmem [shape: f32[2,16,16,4], index: 0, kind: input, shape index: {}]
  %s1 = inlined_call_operand.vmem [shape: f32[36,8], index: 1, kind: input, shape index: {}]
  %s2 = inlined_call_operand.vmem [shape: f32[1,8], index: 2, kind: input, shape index: {}]
  %s3 = inlined_call_operand.vmem [shape: f32[72,16], index: 3, kind: input, shape index: {}]
  %s4 = inlined_call_operand.vmem [shape: f32[1,16], index: 4, kind: input, shape index: {}]
  %s5 = inlined_call_operand.hbm [shape: f32[2,16,16], index: 5, kind: output, shape index: {}]
  %s6 = sld [smem:[#allocation0]]
  $region53: #{conv2d_model_forward.1} parent=0
    _
  %s8 = ssub.s32 1, %s6
  %s9 = scalar_select 0, %s8, %s6
  $region1: #{conv2d_model_forward.1} parent=0
    #allocation4 [shape = 'u8[16384]{0}', space=vmem, size = 0x4000, scoped, tag = 'output window, operand 0']
    #allocation5 [shape = 's32[2]{0}', space=sflag, size = 0x8, scoped, tag = 'scoped memory for conv2d_model_forward.1']
    %10 = vsyncpa [#allocation5], 0
    %s11 = scalar_lea.sflag [#allocation5], 1
    %12 = vsyncpa %s11, 0
    loop: start=0, step=1, limit=4
    $region2: #{conv2d_model_forward.1} parent=1 // loop_pre_header
      _
    $region3: #{conv2d_model_forward.1} parent=1 // loop_header
      %s14 = sphi 0, %s18
      %p15 = scmp.ge.s32.totalorder %s14, 4
      %s24 = sphi 0, %s26
      %s27 = sphi 0, %s24
      %s28 = sphi 0, %s27
      %s44 = sphi 0, %s28
      %s48 = sphi 0, %s48
      %s50 = sphi 0, %s48
      %s51 = sphi 0, %s50
      %s65 = sphi 0, %s51
      %s69 = sphi 0, %s69
      %s71 = sphi 0, %s69
      %s72 = sphi 0, %s71
      %s86 = sphi 0, %s72
      %s90 = sphi 0, %s90
      %s92 = sphi 0, %s90
      %s93 = sphi 0, %s92
      %s107 = sphi 0, %s93
      %s111 = sphi 0, %s111
      %s113 = sphi 0, %s111
      %s114 = sphi 0, %s113
      %s128 = sphi 0, %s114
      %s134 = sphi 0, %s136
      %s137 = sphi 0, %s134
      %s138 = sphi 0, %s137
      %s154 = sphi 0, %s138
    $region4: #{conv2d_model_forward.1} parent=1 // loop_header_branch
      %17 = sbr.rel (%p15) target = $region8
    $region5: #{conv2d_model_forward.1} parent=1 // loop_body
      %s19 = ssub.s32 %s14, 1
      %s20 = ssub.s32 %s14, 2
      %s21 = sadd.s32 %s14, 1
      %s22 = ssub.s32 %s14, %s21
      %p23 = scmp.eq.s32.totalorder %s22, 0
      %s25 = sadd.s32 %s24, 1
      %s26 = scalar_select %p23, %s24, %s25
      %p29 = pneg %p23
      %p30 = scmp.eq.s32.totalorder %s14, 1
      %p31 = por %p29, %p30
      %p32 = scmp.ne.s32.totalorder %s24, %s27
      %p33 = scmp.eq.s32.totalorder %s14, 0
      %p34 = por %p32, %p33
      %p35 = scmp.ne.s32.totalorder %s24, %s27
      %p36 = scmp.eq.s32.totalorder %s19, 1
      %p37 = por %p35, %p36
      %p38 = scmp.ne.s32.totalorder %s27, %s28
      %p39 = scmp.eq.s32.totalorder %s19, 0
      %p40 = por %p38, %p39
      %p41 = scmp.ne.s32.totalorder %s27, %s28
      %p42 = scmp.eq.s32.totalorder %s20, 1
      %p43 = por %p41, %p42
      %p45 = scmp.ne.s32.totalorder %s28, %s44
      %p46 = scmp.eq.s32.totalorder %s20, 0
      %p47 = por %p45, %p46
      %s49 = sadd.s32 %s48, 1
      %p52 = scmp.eq.s32.totalorder %s14, 1
      %p53 = scmp.ne.s32.totalorder %s48, %s50
      %p54 = scmp.eq.s32.totalorder %s14, 0
      %p55 = por %p53, %p54
      %p56 = scmp.ne.s32.totalorder %s48, %s50
      %p57 = scmp.eq.s32.totalorder %s19, 1
      %p58 = por %p56, %p57
      %p59 = scmp.ne.s32.totalorder %s50, %s51
      %p60 = scmp.eq.s32.totalorder %s19, 0
      %p61 = por %p59, %p60
      %p62 = scmp.ne.s32.totalorder %s50, %s51
      %p63 = scmp.eq.s32.totalorder %s20, 1
      %p64 = por %p62, %p63
      %p66 = scmp.ne.s32.totalorder %s51, %s65
      %p67 = scmp.eq.s32.totalorder %s20, 0
      %p68 = por %p66, %p67
      %s70 = sadd.s32 %s69, 1
      %p73 = scmp.eq.s32.totalorder %s14, 1
      %p74 = scmp.ne.s32.totalorder %s69, %s71
      %p75 = scmp.eq.s32.totalorder %s14, 0
      %p76 = por %p74, %p75
      %p77 = scmp.ne.s32.totalorder %s69, %s71
      %p78 = scmp.eq.s32.totalorder %s19, 1
      %p79 = por %p77, %p78
      %p80 = scmp.ne.s32.totalorder %s71, %s72
      %p81 = scmp.eq.s32.totalorder %s19, 0
      %p82 = por %p80, %p81
      %p83 = scmp.ne.s32.totalorder %s71, %s72
      %p84 = scmp.eq.s32.totalorder %s20, 1
      %p85 = por %p83, %p84
      %p87 = scmp.ne.s32.totalorder %s72, %s86
      %p88 = scmp.eq.s32.totalorder %s20, 0
      %p89 = por %p87, %p88
      %s91 = sadd.s32 %s90, 1
      %p94 = scmp.eq.s32.totalorder %s14, 1
      %p95 = scmp.ne.s32.totalorder %s90, %s92
      %p96 = scmp.eq.s32.totalorder %s14, 0
      %p97 = por %p95, %p96
      %p98 = scmp.ne.s32.totalorder %s90, %s92
      %p99 = scmp.eq.s32.totalorder %s19, 1
      %p100 = por %p98, %p99
      %p101 = scmp.ne.s32.totalorder %s92, %s93
      %p102 = scmp.eq.s32.totalorder %s19, 0
      %p103 = por %p101, %p102
      %p104 = scmp.ne.s32.totalorder %s92, %s93
      %p105 = scmp.eq.s32.totalorder %s20, 1
      %p106 = por %p104, %p105
      %p108 = scmp.ne.s32.totalorder %s93, %s107
      %p109 = scmp.eq.s32.totalorder %s20, 0
      %p110 = por %p108, %p109
      %s112 = sadd.s32 %s111, 1
      %p115 = scmp.eq.s32.totalorder %s14, 1
      %p116 = scmp.ne.s32.totalorder %s111, %s113
      %p117 = scmp.eq.s32.totalorder %s14, 0
      %p118 = por %p116, %p117
      %p119 = scmp.ne.s32.totalorder %s111, %s113
      %p120 = scmp.eq.s32.totalorder %s19, 1
      %p121 = por %p119, %p120
      %p122 = scmp.ne.s32.totalorder %s113, %s114
      %p123 = scmp.eq.s32.totalorder %s19, 0
      %p124 = por %p122, %p123
      %p125 = scmp.ne.s32.totalorder %s113, %s114
      %p126 = scmp.eq.s32.totalorder %s20, 1
      %p127 = por %p125, %p126
      %p129 = scmp.ne.s32.totalorder %s114, %s128
      %p130 = scmp.eq.s32.totalorder %s20, 0
      %p131 = por %p129, %p130
      %s132 = ssub.s32 %s14, %s21
      %p133 = scmp.eq.s32.totalorder %s132, 0
      %s135 = sadd.s32 %s134, 1
      %s136 = scalar_select %p133, %s134, %s135
      %p139 = pneg %p133
      %p140 = scmp.eq.s32.totalorder %s14, 1
      %p141 = por %p139, %p140
      %p142 = scmp.ne.s32.totalorder %s134, %s137
      %p143 = scmp.eq.s32.totalorder %s14, 0
      %p144 = por %p142, %p143
      %p145 = scmp.ne.s32.totalorder %s134, %s137
      %p146 = scmp.eq.s32.totalorder %s19, 1
      %p147 = por %p145, %p146
      %p148 = scmp.ne.s32.totalorder %s137, %s138
      %p149 = scmp.eq.s32.totalorder %s19, 0
      %p150 = por %p148, %p149
      %p151 = scmp.ne.s32.totalorder %s137, %s138
      %p152 = scmp.eq.s32.totalorder %s20, 1
      %p153 = por %p151, %p152
      %p155 = scmp.ne.s32.totalorder %s138, %s154
      %p156 = scmp.eq.s32.totalorder %s20, 0
      %p157 = por %p155, %p156
      %p158 = scmp.le.s32.totalorder 1, %s14
      %p159 = scmp.lt.s32.totalorder %s14, 3
      %p160 = pnand %p158, %p159
      %p161 = pneg %p160
      // Predicated region
      $region9: #{conv2d_model_forward.1} parent=5 // pred_check
        _
      $region10: #{conv2d_model_forward.1} parent=5 // pred_check_branch
        %163 = sbr.rel (%p160) target = $region12
      $region11: #{conv2d_model_forward.1} parent=5 // pred_region
        %s164 = ssub.s32 %s14, 1
        // Predicated region
        $region13: #{conv2d_model_forward.1} parent=11 // pred_check
          %p165 = pneg %p61
        $region14: #{conv2d_model_forward.1} parent=11 // pred_check_branch
          %167 = sbr.rel (%p165) target = $region16
        $region15: #{conv2d_model_forward.1} parent=11 // pred_region
          _
        $region16: #{conv2d_model_forward.1} parent=11 // pred_fallthru
          _
        // Predicated region
        $region17: #{conv2d_model_forward.1} parent=11 // pred_check
          %p168 = pneg %p82
        $region18: #{conv2d_model_forward.1} parent=11 // pred_check_branch
          %170 = sbr.rel (%p168) target = $region20
        $region19: #{conv2d_model_forward.1} parent=11 // pred_region
          _
        $region20: #{conv2d_model_forward.1} parent=11 // pred_fallthru
          _
        // Predicated region
        $region21: #{conv2d_model_forward.1} parent=11 // pred_check
          %p171 = pneg %p103
        $region22: #{conv2d_model_forward.1} parent=11 // pred_check_branch
          %173 = sbr.rel (%p171) target = $region24
        $region23: #{conv2d_model_forward.1} parent=11 // pred_region
          _
        $region24: #{conv2d_model_forward.1} parent=11 // pred_fallthru
          _
        // Predicated region
        $region25: #{conv2d_model_forward.1} parent=11 // pred_check
          %p174 = pneg %p124
        $region26: #{conv2d_model_forward.1} parent=11 // pred_check_branch
          %176 = sbr.rel (%p174) target = $region28
        $region27: #{conv2d_model_forward.1} parent=11 // pred_region
          _
        $region28: #{conv2d_model_forward.1} parent=11 // pred_fallthru
          _
      $region12: #{conv2d_model_forward.1} parent=5 // pred_fallthru
        _
      %p177 = scmp.lt.s32.totalorder %s14, 2
      // Predicated region
      $region29: #{conv2d_model_forward.1} parent=5 // pred_check
        %p178 = pneg %p177
      $region30: #{conv2d_model_forward.1} parent=5 // pred_check_branch
        %180 = sbr.rel (%p178) target = $region32
      $region31: #{conv2d_model_forward.1} parent=5 // pred_region
        // Predicated region
        $region33: #{conv2d_model_forward.1} parent=31 // pred_check
          %p181 = pneg %p34
        $region34: #{conv2d_model_forward.1} parent=31 // pred_check_branch
          %183 = sbr.rel (%p181) target = $region36
        $region35: #{conv2d_model_forward.1} parent=31 // pred_region
          %p184 = scmp.lt.s32.totalorder %s14, 1
          %s185 = scalar_select %p184, %s14, 1
          %s186 = smul.addr %s185, 32
          %s187 = smul.addr %s186, 8
          %s188 = scalar_lea.vmem %s0, %s187
        $region36: #{conv2d_model_forward.1} parent=31 // pred_fallthru
          _
      $region32: #{conv2d_model_forward.1} parent=5 // pred_fallthru
        _
      %p189 = scmp.le.s32.totalorder 1, %s14
      %p190 = scmp.lt.s32.totalorder %s14, 3
      %p191 = pnand %p189, %p190
      %p192 = pneg %p191
      // Predicated region
      $region37: #{conv2d_model_forward.1} parent=5 // pred_check
        _
      $region38: #{conv2d_model_forward.1} parent=5 // pred_check_branch
        %194 = sbr.rel (%p191) target = $region40
      $region39: #{conv2d_model_forward.1} parent=5 // pred_region
        %s195 = ssub.s32 %s14, 1
        %p196 = scmp.lt.s32.totalorder %s19, 1
        %s197 = scalar_select %p196, %s19, 1
        %s198 = smul.addr %s197, 32
        %s199 = smul.addr %s198, 8
        %s200 = scalar_lea.vmem %s0, %s199
        %p201 = pneg %p40
        %p202 = pneg %p37
        %p203 = pneg %p61
        %p204 = pneg %p58
        %p205 = pneg %p82
        %p206 = pneg %p79
        %p207 = pneg %p103
        %p208 = pneg %p100
        %p209 = pneg %p124
        %p210 = pneg %p121
        %p211 = pneg %p150
        %p212 = pneg %p147
        %s213 = sand.u32 %s137, 1
        %s214 = scalar_lea.sflag [#allocation5], %s213
        %s215 = sand.u32 %s137, 1
        %s216 = smul.addr %s215, 16
        %s217 = scalar_lea.vmem [#allocation4], %s216
        %p218 = scmp.lt.s32.totalorder %s19, 1
        %s219 = scalar_select %p218, %s19, 1
        %s220 = smul.addr %s219, 32
        %s221 = smul.addr %s220, 8
        %s222 = scalar_lea.vmem %s0, %s221
        %vm223 = vcmask 31744
        %224 = vst.msk [vmem:[#allocation2] sm:$0xff] %vm223, 0.0
        %225 = vst.msk [vmem:[#allocation2 + $0x8] sm:$0xff] %vm223, 0.0
        %vm226 = vcmask 25600
        %227 = vst.msk [vmem:[#allocation2 + $0x10] sm:$0x3] %vm226, 0.0
        %228 = vst.msk [vmem:[#allocation2 + $0x18] sm:$0xff] %vm223, 0.0
        %229 = vst.msk [vmem:[#allocation2 + $0x20] sm:$0xff] %vm223, 0.0
        %230 = vst.msk [vmem:[#allocation2 + $0x28] sm:$0x3] %vm226, 0.0
        %231 = vst.msk [vmem:[#allocation2 + $0x30] sm:$0xff] %vm223, 0.0
        %232 = vst.msk [vmem:[#allocation2 + $0x38] sm:$0xff] %vm223, 0.0
        %233 = vst.msk [vmem:[#allocation2 + $0x40] sm:$0x3] %vm226, 0.0
        %234 = vst.msk [vmem:[#allocation2 + $0x48] sm:$0xff] %vm223, 0.0
        %235 = vst.msk [vmem:[#allocation2 + $0x50] sm:$0xff] %vm223, 0.0
        %236 = vst.msk [vmem:[#allocation2 + $0x58] sm:$0x3] %vm226, 0.0
        %237 = vst.msk [vmem:[#allocation2 + $0x60] sm:$0xff] %vm223, 0.0
        %238 = vst.msk [vmem:[#allocation2 + $0x68] sm:$0xff] %vm223, 0.0
        %239 = vst.msk [vmem:[#allocation2 + $0x70] sm:$0x3] %vm226, 0.0
        %240 = vst.msk [vmem:[#allocation2 + $0x78] sm:$0xff] %vm223, 0.0
        %241 = vst.msk [vmem:[#allocation2 + $0x80] sm:$0xff] %vm223, 0.0
        %242 = vst.msk [vmem:[#allocation2 + $0x88] sm:$0x3] %vm226, 0.0
        %243 = vst.msk [vmem:[#allocation2 + $0x90] sm:$0xff] %vm223, 0.0
        %244 = vst.msk [vmem:[#allocation2 + $0x98] sm:$0xff] %vm223, 0.0
        %245 = vst.msk [vmem:[#allocation2 + $0xa0] sm:$0x3] %vm226, 0.0
        %246 = vst.msk [vmem:[#allocation2 + $0xa8] sm:$0xff] %vm223, 0.0
        %247 = vst.msk [vmem:[#allocation2 + $0xb0] sm:$0xff] %vm223, 0.0
        %248 = vst.msk [vmem:[#allocation2 + $0xb8] sm:$0x3] %vm226, 0.0
        %249 = vst.msk [vmem:[#allocation2 + $0xc0] sm:$0xff] %vm223, 0.0
        %250 = vst.msk [vmem:[#allocation2 + $0xc8] sm:$0xff] %vm223, 0.0
        %251 = vst.msk [vmem:[#allocation2 + $0xd0] sm:$0x3] %vm226, 0.0
        %252 = vst.msk [vmem:[#allocation2 + $0xd8] sm:$0xff] %vm223, 0.0
        %253 = vst.msk [vmem:[#allocation2 + $0xe0] sm:$0xff] %vm223, 0.0
        %254 = vst.msk [vmem:[#allocation2 + $0xe8] sm:$0x3] %vm226, 0.0
        %255 = vst.msk [vmem:[#allocation2 + $0xf0] sm:$0xff] %vm223, 0.0
        %256 = vst.msk [vmem:[#allocation2 + $0xf8] sm:$0xff] %vm223, 0.0
        %257 = vst.msk [vmem:[#allocation2 + $0x100] sm:$0x3] %vm226, 0.0
        %258 = vst.msk [vmem:[#allocation2 + $0x108] sm:$0xff] %vm223, 0.0
        %259 = vst.msk [vmem:[#allocation2 + $0x110] sm:$0xff] %vm223, 0.0
        %260 = vst.msk [vmem:[#allocation2 + $0x118] sm:$0x3] %vm226, 0.0
        %261 = vst.msk [vmem:[#allocation2 + $0x120] sm:$0xff] %vm223, 0.0
        %262 = vst.msk [vmem:[#allocation2 + $0x128] sm:$0xff] %vm223, 0.0
        %263 = vst.msk [vmem:[#allocation2 + $0x130] sm:$0x3] %vm226, 0.0
        %264 = vst.msk [vmem:[#allocation2 + $0x138] sm:$0xff] %vm223, 0.0
        %265 = vst.msk [vmem:[#allocation2 + $0x140] sm:$0xff] %vm223, 0.0
        %266 = vst.msk [vmem:[#allocation2 + $0x148] sm:$0x3] %vm226, 0.0
        %267 = vst.msk [vmem:[#allocation2 + $0x150] sm:$0xff] %vm223, 0.0
        %268 = vst.msk [vmem:[#allocation2 + $0x158] sm:$0xff] %vm223, 0.0
        %269 = vst.msk [vmem:[#allocation2 + $0x160] sm:$0x3] %vm226, 0.0
        %270 = vst.msk [vmem:[#allocation2 + $0x168] sm:$0xff] %vm223, 0.0
        %271 = vst.msk [vmem:[#allocation2 + $0x170] sm:$0xff] %vm223, 0.0
        %272 = vst.msk [vmem:[#allocation2 + $0x178] sm:$0x3] %vm226, 0.0
        %273 = vst.msk [vmem:[#allocation2 + $0x180] sm:$0xff] %vm223, 0.0
        %274 = vst.msk [vmem:[#allocation2 + $0x188] sm:$0xff] %vm223, 0.0
        %275 = vst.msk [vmem:[#allocation2 + $0x190] sm:$0x3] %vm226, 0.0
        %276 = vst.msk [vmem:[#allocation2 + $0x198] sm:$0xff] %vm223, 0.0
        %277 = vst.msk [vmem:[#allocation2 + $0x1a0] sm:$0xff] %vm223, 0.0
        %278 = vst.msk [vmem:[#allocation2 + $0x1a8] sm:$0x3] %vm226, 0.0
        %vm279 = vcmask 64512
        %280 = vst.msk [vmem:[#allocation3] sm:$0xff] %vm279, 0.0
        %vm281 = vcmask 58368
        %282 = vst.msk [vmem:[#allocation3 + $0x8] sm:$0x3] %vm281, 0.0
        %283 = vst.msk [vmem:[#allocation3 + $0x10] sm:$0xff] %vm279, 0.0
        %284 = vst.msk [vmem:[#allocation3 + $0x18] sm:$0x3] %vm281, 0.0
        %285 = vst.msk [vmem:[#allocation3 + $0x20] sm:$0xff] %vm279, 0.0
        %286 = vst.msk [vmem:[#allocation3 + $0x28] sm:$0x3] %vm281, 0.0
        %287 = vst.msk [vmem:[#allocation3 + $0x30] sm:$0xff] %vm279, 0.0
        %288 = vst.msk [vmem:[#allocation3 + $0x38] sm:$0x3] %vm281, 0.0
        %289 = vst.msk [vmem:[#allocation3 + $0x40] sm:$0xff] %vm279, 0.0
        %290 = vst.msk [vmem:[#allocation3 + $0x48] sm:$0x3] %vm281, 0.0
        %291 = vst.msk [vmem:[#allocation3 + $0x50] sm:$0xff] %vm279, 0.0
        %292 = vst.msk [vmem:[#allocation3 + $0x58] sm:$0x3] %vm281, 0.0
        %293 = vst.msk [vmem:[#allocation3 + $0x60] sm:$0xff] %vm279, 0.0
        %294 = vst.msk [vmem:[#allocation3 + $0x68] sm:$0x3] %vm281, 0.0
        %295 = vst.msk [vmem:[#allocation3 + $0x70] sm:$0xff] %vm279, 0.0
        %296 = vst.msk [vmem:[#allocation3 + $0x78] sm:$0x3] %vm281, 0.0
        %297 = vst.msk [vmem:[#allocation3 + $0x80] sm:$0xff] %vm279, 0.0
        %298 = vst.msk [vmem:[#allocation3 + $0x88] sm:$0x3] %vm281, 0.0
        %299 = vst.msk [vmem:[#allocation3 + $0x90] sm:$0xff] %vm279, 0.0
        %300 = vst.msk [vmem:[#allocation3 + $0x98] sm:$0x3] %vm281, 0.0
        %v301 = vld [vmem:[%s222] sm:$0xff]
        %v302 = vld [vmem:[%s222 + $0x8] sm:$0xff]
        %v303 = vld [vmem:[%s222 + $0x10] sm:$0xff]
        %v304 = vld [vmem:[%s222 + $0x18] sm:$0xff]
        %v305 = vld [vmem:[%s222 + $0x20] sm:$0xff]
        %v306 = vld [vmem:[%s222 + $0x28] sm:$0xff]
        %v307 = vld [vmem:[%s222 + $0x30] sm:$0xff]
        %v308 = vld [vmem:[%s222 + $0x38] sm:$0xff]
        %v309 = vld [vmem:[%s222 + $0x40] sm:$0xff]
        %v310 = vld [vmem:[%s222 + $0x48] sm:$0xff]
        %v311 = vld [vmem:[%s222 + $0x50] sm:$0xff]
        %v312 = vld [vmem:[%s222 + $0x58] sm:$0xff]
        %v313 = vld [vmem:[%s222 + $0x60] sm:$0xff]
        %v314 = vld [vmem:[%s222 + $0x68] sm:$0xff]
        %v315 = vld [vmem:[%s222 + $0x70] sm:$0xff]
        %v316 = vld [vmem:[%s222 + $0x78] sm:$0xff]
        %v317 = vld [vmem:[%s222 + $0x80] sm:$0xff]
        %v318 = vld [vmem:[%s222 + $0x88] sm:$0xff]
        %v319 = vld [vmem:[%s222 + $0x90] sm:$0xff]
        %v320 = vld [vmem:[%s222 + $0x98] sm:$0xff]
        %v321 = vld [vmem:[%s222 + $0xa0] sm:$0xff]
        %v322 = vld [vmem:[%s222 + $0xa8] sm:$0xff]
        %v323 = vld [vmem:[%s222 + $0xb0] sm:$0xff]
        %v324 = vld [vmem:[%s222 + $0xb8] sm:$0xff]
        %v325 = vld [vmem:[%s222 + $0xc0] sm:$0xff]
        %v326 = vld [vmem:[%s222 + $0xc8] sm:$0xff]
        %v327 = vld [vmem:[%s222 + $0xd0] sm:$0xff]
        %v328 = vld [vmem:[%s222 + $0xd8] sm:$0xff]
        %v329 = vld [vmem:[%s222 + $0xe0] sm:$0xff]
        %v330 = vld [vmem:[%s222 + $0xe8] sm:$0xff]
        %v331 = vld [vmem:[%s222 + $0xf0] sm:$0xff]
        %v332 = vld [vmem:[%s222 + $0xf8] sm:$0xff]
        %s333 = scalar_lea.vmem [#allocation2], 24
        %334 = vst.msk [vmem:[%s333 + $0x1] sm:$0xff] %vm223, %v301
        %335 = vst.msk [vmem:[%s333 + $0x9] sm:$0xff] %vm223, %v302
        %336 = vst.msk [vmem:[%s333 + $0x19] sm:$0xff] %vm223, %v303
        %337 = vst.msk [vmem:[%s333 + $0x21] sm:$0xff] %vm223, %v304
        %338 = vst.msk [vmem:[%s333 + $0x31] sm:$0xff] %vm223, %v305
        %339 = vst.msk [vmem:[%s333 + $0x39] sm:$0xff] %vm223, %v306
        %340 = vst.msk [vmem:[%s333 + $0x49] sm:$0xff] %vm223, %v307
        %341 = vst.msk [vmem:[%s333 + $0x51] sm:$0xff] %vm223, %v308
        %342 = vst.msk [vmem:[%s333 + $0x61] sm:$0xff] %vm223, %v309
        %343 = vst.msk [vmem:[%s333 + $0x69] sm:$0xff] %vm223, %v310
        %344 = vst.msk [vmem:[%s333 + $0x79] sm:$0xff] %vm223, %v311
        %345 = vst.msk [vmem:[%s333 + $0x81] sm:$0xff] %vm223, %v312
        %346 = vst.msk [vmem:[%s333 + $0x91] sm:$0xff] %vm223, %v313
        %347 = vst.msk [vmem:[%s333 + $0x99] sm:$0xff] %vm223, %v314
        %348 = vst.msk [vmem:[%s333 + $0xa9] sm:$0xff] %vm223, %v315
        %349 = vst.msk [vmem:[%s333 + $0xb1] sm:$0xff] %vm223, %v316
        %350 = vst.msk [vmem:[%s333 + $0xc1] sm:$0xff] %vm223, %v317
        %351 = vst.msk [vmem:[%s333 + $0xc9] sm:$0xff] %vm223, %v318
        %352 = vst.msk [vmem:[%s333 + $0xd9] sm:$0xff] %vm223, %v319
        %353 = vst.msk [vmem:[%s333 + $0xe1] sm:$0xff] %vm223, %v320
        %354 = vst.msk [vmem:[%s333 + $0xf1] sm:$0xff] %vm223, %v321
        %355 = vst.msk [vmem:[%s333 + $0xf9] sm:$0xff] %vm223, %v322
        %356 = vst.msk [vmem:[%s333 + $0x109] sm:$0xff] %vm223, %v323
        %357 = vst.msk [vmem:[%s333 + $0x111] sm:$0xff] %vm223, %v324
        %358 = vst.msk [vmem:[%s333 + $0x121] sm:$0xff] %vm223, %v325
        %359 = vst.msk [vmem:[%s333 + $0x129] sm:$0xff] %vm223, %v326
        %360 = vst.msk [vmem:[%s333 + $0x139] sm:$0xff] %vm223, %v327
        %361 = vst.msk [vmem:[%s333 + $0x141] sm:$0xff] %vm223, %v328
        %362 = vst.msk [vmem:[%s333 + $0x151] sm:$0xff] %vm223, %v329
        %363 = vst.msk [vmem:[%s333 + $0x159] sm:$0xff] %vm223, %v330
        %364 = vst.msk [vmem:[%s333 + $0x169] sm:$0xff] %vm223, %v331
        %365 = vst.msk [vmem:[%s333 + $0x171] sm:$0xff] %vm223, %v332
        %v366 = vld [vmem:[#allocation2] ss:$2 sm:$0xff]
        %s367 = scalar_lea.vmem [#allocation2], 48
        %v368 = vld [vmem:[%s367] ss:$2 sm:$0xff]
        %s369 = scalar_lea.vmem [#allocation2], 96
        %v370 = vld [vmem:[%s369] ss:$2 sm:$0xff]
        %s371 = scalar_lea.vmem [#allocation2], 144
        %v372 = vld [vmem:[%s371] ss:$2 sm:$0xff]
        %s373 = scalar_lea.vmem [#allocation2], 192
        %v374 = vld [vmem:[%s373] ss:$2 sm:$0xff]
        %s375 = scalar_lea.vmem [#allocation2], 240
        %v376 = vld [vmem:[%s375] ss:$2 sm:$0xff]
        %s377 = scalar_lea.vmem [#allocation2], 288
        %v378 = vld [vmem:[%s377] ss:$2 sm:$0xff]
        %s379 = scalar_lea.vmem [#allocation2], 336
        %v380 = vld [vmem:[%s379] ss:$2 sm:$0xff]
        %s381 = scalar_lea.vmem [#allocation2], 1
        %v382 = vld [vmem:[%s381] ss:$2 sm:$0xff]
        %s383 = scalar_lea.vmem [#allocation2], 49
        %v384 = vld [vmem:[%s383] ss:$2 sm:$0xff]
        %s385 = scalar_lea.vmem [#allocation2], 97
        %v386 = vld [vmem:[%s385] ss:$2 sm:$0xff]
        %s387 = scalar_lea.vmem [#allocation2], 145
        %v388 = vld [vmem:[%s387] ss:$2 sm:$0xff]
        %s389 = scalar_lea.vmem [#allocation2], 193
        %v390 = vld [vmem:[%s389] ss:$2 sm:$0xff]
        %s391 = scalar_lea.vmem [#allocation2], 241
        %v392 = vld [vmem:[%s391] ss:$2 sm:$0xff]
        %s393 = scalar_lea.vmem [#allocation2], 289
        %v394 = vld [vmem:[%s393] ss:$2 sm:$0xff]
        %s395 = scalar_lea.vmem [#allocation2], 337
        %v396 = vld [vmem:[%s395] ss:$2 sm:$0xff]
        %s397 = scalar_lea.vmem [#allocation2], 2
        %v398 = vld [vmem:[%s397] ss:$2 sm:$0xff]
        %s399 = scalar_lea.vmem [#allocation2], 50
        %v400 = vld [vmem:[%s399] ss:$2 sm:$0xff]
        %s401 = scalar_lea.vmem [#allocation2], 98
        %v402 = vld [vmem:[%s401] ss:$2 sm:$0xff]
        %s403 = scalar_lea.vmem [#allocation2], 146
        %v404 = vld [vmem:[%s403] ss:$2 sm:$0xff]
        %s405 = scalar_lea.vmem [#allocation2], 194
        %v406 = vld [vmem:[%s405] ss:$2 sm:$0xff]
        %s407 = scalar_lea.vmem [#allocation2], 242
        %v408 = vld [vmem:[%s407] ss:$2 sm:$0xff]
        %s409 = scalar_lea.vmem [#allocation2], 290
        %v410 = vld [vmem:[%s409] ss:$2 sm:$0xff]
        %s411 = scalar_lea.vmem [#allocation2], 338
        %v412 = vld [vmem:[%s411] ss:$2 sm:$0xff]
        %v413 = vld [vmem:[%s333] ss:$2 sm:$0xff]
        %s414 = scalar_lea.vmem %s333, 48 [#allocation2]
        %v415 = vld [vmem:[%s414] ss:$2 sm:$0xff]
        %s416 = scalar_lea.vmem %s333, 96 [#allocation2]
        %v417 = vld [vmem:[%s416] ss:$2 sm:$0xff]
        %s418 = scalar_lea.vmem %s333, 144 [#allocation2]
        %v419 = vld [vmem:[%s418] ss:$2 sm:$0xff]
        %s420 = scalar_lea.vmem %s333, 192 [#allocation2]
        %v421 = vld [vmem:[%s420] ss:$2 sm:$0xff]
        %s422 = scalar_lea.vmem %s333, 240 [#allocation2]
        %v423 = vld [vmem:[%s422] ss:$2 sm:$0xff]
        %s424 = scalar_lea.vmem %s333, 288 [#allocation2]
        %v425 = vld [vmem:[%s424] ss:$2 sm:$0xff]
        %s426 = scalar_lea.vmem %s333, 336 [#allocation2]
        %v427 = vld [vmem:[%s426] ss:$2 sm:$0xff]
        %s428 = scalar_lea.vmem %s333, 1 [#allocation2]
        %v429 = vld [vmem:[%s428] ss:$2 sm:$0xff]
        %s430 = scalar_lea.vmem %s333, 49 [#allocation2]
        %v431 = vld [vmem:[%s430] ss:$2 sm:$0xff]
        %s432 = scalar_lea.vmem %s333, 97 [#allocation2]
        %v433 = vld [vmem:[%s432] ss:$2 sm:$0xff]
        %s434 = scalar_lea.vmem %s333, 145 [#allocation2]
        %v435 = vld [vmem:[%s434] ss:$2 sm:$0xff]
        %s436 = scalar_lea.vmem %s333, 193 [#allocation2]
        %v437 = vld [vmem:[%s436] ss:$2 sm:$0xff]
        %s438 = scalar_lea.vmem %s333, 241 [#allocation2]
        %v439 = vld [vmem:[%s438] ss:$2 sm:$0xff]
        %s440 = scalar_lea.vmem %s333, 289 [#allocation2]
        %v441 = vld [vmem:[%s440] ss:$2 sm:$0xff]
        %s442 = scalar_lea.vmem %s333, 337 [#allocation2]
        %v443 = vld [vmem:[%s442] ss:$2 sm:$0xff]
        %s444 = scalar_lea.vmem %s333, 2 [#allocation2]
        %v445 = vld [vmem:[%s444] ss:$2 sm:$0xff]
        %s446 = scalar_lea.vmem %s333, 50 [#allocation2]
        %v447 = vld [vmem:[%s446] ss:$2 sm:$0xff]
        %s448 = scalar_lea.vmem %s333, 98 [#allocation2]
        %v449 = vld [vmem:[%s448] ss:$2 sm:$0xff]
        %s450 = scalar_lea.vmem %s333, 146 [#allocation2]
        %v451 = vld [vmem:[%s450] ss:$2 sm:$0xff]
        %s452 = scalar_lea.vmem %s333, 194 [#allocation2]
        %v453 = vld [vmem:[%s452] ss:$2 sm:$0xff]
        %s454 = scalar_lea.vmem %s333, 242 [#allocation2]
        %v455 = vld [vmem:[%s454] ss:$2 sm:$0xff]
        %s456 = scalar_lea.vmem %s333, 290 [#allocation2]
        %v457 = vld [vmem:[%s456] ss:$2 sm:$0xff]
        %s458 = scalar_lea.vmem %s333, 338 [#allocation2]
        %v459 = vld [vmem:[%s458] ss:$2 sm:$0xff]
        %s460 = scalar_lea.vmem [#allocation2], 48
        %v461 = vld [vmem:[%s460] ss:$2 sm:$0xff]
        %s462 = scalar_lea.vmem %s460, 48 [#allocation2]
        %v463 = vld [vmem:[%s462] ss:$2 sm:$0xff]
        %s464 = scalar_lea.vmem %s460, 96 [#allocation2]
        %v465 = vld [vmem:[%s464] ss:$2 sm:$0xff]
        %s466 = scalar_lea.vmem %s460, 144 [#allocation2]
        %v467 = vld [vmem:[%s466] ss:$2 sm:$0xff]
        %s468 = scalar_lea.vmem %s460, 192 [#allocation2]
        %v469 = vld [vmem:[%s468] ss:$2 sm:$0xff]
        %s470 = scalar_lea.vmem %s460, 240 [#allocation2]
        %v471 = vld [vmem:[%s470] ss:$2 sm:$0xff]
        %s472 = scalar_lea.vmem %s460, 288 [#allocation2]
        %v473 = vld [vmem:[%s472] ss:$2 sm:$0xff]
        %s474 = scalar_lea.vmem %s460, 336 [#allocation2]
        %v475 = vld [vmem:[%s474] ss:$2 sm:$0xff]
        %s476 = scalar_lea.vmem %s460, 1 [#allocation2]
        %v477 = vld [vmem:[%s476] ss:$2 sm:$0xff]
        %s478 = scalar_lea.vmem %s460, 49 [#allocation2]
        %v479 = vld [vmem:[%s478] ss:$2 sm:$0xff]
        %s480 = scalar_lea.vmem %s460, 97 [#allocation2]
        %v481 = vld [vmem:[%s480] ss:$2 sm:$0xff]
        %s482 = scalar_lea.vmem %s460, 145 [#allocation2]
        %v483 = vld [vmem:[%s482] ss:$2 sm:$0xff]
        %s484 = scalar_lea.vmem %s460, 193 [#allocation2]
        %v485 = vld [vmem:[%s484] ss:$2 sm:$0xff]
        %s486 = scalar_lea.vmem %s460, 241 [#allocation2]
        %v487 = vld [vmem:[%s486] ss:$2 sm:$0xff]
        %s488 = scalar_lea.vmem %s460, 289 [#allocation2]
        %v489 = vld [vmem:[%s488] ss:$2 sm:$0xff]
        %s490 = scalar_lea.vmem %s460, 337 [#allocation2]
        %v491 = vld [vmem:[%s490] ss:$2 sm:$0xff]
        %s492 = scalar_lea.vmem %s460, 2 [#allocation2]
        %v493 = vld [vmem:[%s492] ss:$2 sm:$0xff]
        %s494 = scalar_lea.vmem %s460, 50 [#allocation2]
        %v495 = vld [vmem:[%s494] ss:$2 sm:$0xff]
        %s496 = scalar_lea.vmem %s460, 98 [#allocation2]
        %v497 = vld [vmem:[%s496] ss:$2 sm:$0xff]
        %s498 = scalar_lea.vmem %s460, 146 [#allocation2]
        %v499 = vld [vmem:[%s498] ss:$2 sm:$0xff]
        %s500 = scalar_lea.vmem %s460, 194 [#allocation2]
        %v501 = vld [vmem:[%s500] ss:$2 sm:$0xff]
        %s502 = scalar_lea.vmem %s460, 242 [#allocation2]
        %v503 = vld [vmem:[%s502] ss:$2 sm:$0xff]
        %s504 = scalar_lea.vmem %s460, 290 [#allocation2]
        %v505 = vld [vmem:[%s504] ss:$2 sm:$0xff]
        %s506 = scalar_lea.vmem %s460, 338 [#allocation2]
        %v507 = vld [vmem:[%s506] ss:$2 sm:$0xff]
        %516 = vrot.lane.b32.xlu0 %v382, 4
        %v517 = vpop.permute.xlu0 %516
        %518 = vrot.lane.b32.xlu0 %v384, 4
        %v519 = vpop.permute.xlu0 %518
        %520 = vrot.lane.b32.xlu0 %v386, 4
        %v521 = vpop.permute.xlu0 %520
        %522 = vrot.lane.b32.xlu0 %v388, 4
        %v523 = vpop.permute.xlu0 %522
        %524 = vrot.lane.b32.xlu0 %v390, 4
        %v525 = vpop.permute.xlu0 %524
        %526 = vrot.lane.b32.xlu0 %v392, 4
        %v527 = vpop.permute.xlu0 %526
        %528 = vrot.lane.b32.xlu0 %v394, 4
        %v529 = vpop.permute.xlu0 %528
        %530 = vrot.lane.b32.xlu0 %v396, 4
        %v531 = vpop.permute.xlu0 %530
        %548 = vrot.lane.b32.xlu0 %v398, 8
        %v549 = vpop.permute.xlu0 %548
        %550 = vrot.lane.b32.xlu0 %v400, 8
        %v551 = vpop.permute.xlu0 %550
        %552 = vrot.lane.b32.xlu0 %v402, 8
        %v553 = vpop.permute.xlu0 %552
        %554 = vrot.lane.b32.xlu0 %v404, 8
        %v555 = vpop.permute.xlu0 %554
        %556 = vrot.lane.b32.xlu0 %v406, 8
        %v557 = vpop.permute.xlu0 %556
        %558 = vrot.lane.b32.xlu0 %v408, 8
        %v559 = vpop.permute.xlu0 %558
        %560 = vrot.lane.b32.xlu0 %v410, 8
        %v561 = vpop.permute.xlu0 %560
        %562 = vrot.lane.b32.xlu0 %v412, 8
        %v563 = vpop.permute.xlu0 %562
        %580 = vrot.lane.b32.xlu0 %v413, 12
        %v581 = vpop.permute.xlu0 %580
        %582 = vrot.lane.b32.xlu0 %v415, 12
        %v583 = vpop.permute.xlu0 %582
        %584 = vrot.lane.b32.xlu0 %v417, 12
        %v585 = vpop.permute.xlu0 %584
        %586 = vrot.lane.b32.xlu0 %v419, 12
        %v587 = vpop.permute.xlu0 %586
        %588 = vrot.lane.b32.xlu0 %v421, 12
        %v589 = vpop.permute.xlu0 %588
        %590 = vrot.lane.b32.xlu0 %v423, 12
        %v591 = vpop.permute.xlu0 %590
        %592 = vrot.lane.b32.xlu0 %v425, 12
        %v593 = vpop.permute.xlu0 %592
        %594 = vrot.lane.b32.xlu0 %v427, 12
        %v595 = vpop.permute.xlu0 %594
        %612 = vrot.lane.b32.xlu0 %v429, 16
        %v613 = vpop.permute.xlu0 %612
        %614 = vrot.lane.b32.xlu0 %v431, 16
        %v615 = vpop.permute.xlu0 %614
        %616 = vrot.lane.b32.xlu0 %v433, 16
        %v617 = vpop.permute.xlu0 %616
        %618 = vrot.lane.b32.xlu0 %v435, 16
        %v619 = vpop.permute.xlu0 %618
        %620 = vrot.lane.b32.xlu0 %v437, 16
        %v621 = vpop.permute.xlu0 %620
        %622 = vrot.lane.b32.xlu0 %v439, 16
        %v623 = vpop.permute.xlu0 %622
        %624 = vrot.lane.b32.xlu0 %v441, 16
        %v625 = vpop.permute.xlu0 %624
        %626 = vrot.lane.b32.xlu0 %v443, 16
        %v627 = vpop.permute.xlu0 %626
        %644 = vrot.lane.b32.xlu0 %v445, 20
        %v645 = vpop.permute.xlu0 %644
        %646 = vrot.lane.b32.xlu0 %v447, 20
        %v647 = vpop.permute.xlu0 %646
        %648 = vrot.lane.b32.xlu0 %v449, 20
        %v649 = vpop.permute.xlu0 %648
        %650 = vrot.lane.b32.xlu0 %v451, 20
        %v651 = vpop.permute.xlu0 %650
        %652 = vrot.lane.b32.xlu0 %v453, 20
        %v653 = vpop.permute.xlu0 %652
        %654 = vrot.lane.b32.xlu0 %v455, 20
        %v655 = vpop.permute.xlu0 %654
        %656 = vrot.lane.b32.xlu0 %v457, 20
        %v657 = vpop.permute.xlu0 %656
        %658 = vrot.lane.b32.xlu0 %v459, 20
        %v659 = vpop.permute.xlu0 %658
        %676 = vrot.lane.b32.xlu0 %v461, 24
        %v677 = vpop.permute.xlu0 %676
        %678 = vrot.lane.b32.xlu0 %v463, 24
        %v679 = vpop.permute.xlu0 %678
        %680 = vrot.lane.b32.xlu0 %v465, 24
        %v681 = vpop.permute.xlu0 %680
        %682 = vrot.lane.b32.xlu0 %v467, 24
        %v683 = vpop.permute.xlu0 %682
        %684 = vrot.lane.b32.xlu0 %v469, 24
        %v685 = vpop.permute.xlu0 %684
        %686 = vrot.lane.b32.xlu0 %v471, 24
        %v687 = vpop.permute.xlu0 %686
        %688 = vrot.lane.b32.xlu0 %v473, 24
        %v689 = vpop.permute.xlu0 %688
        %690 = vrot.lane.b32.xlu0 %v475, 24
        %v691 = vpop.permute.xlu0 %690
        %708 = vrot.lane.b32.xlu0 %v477, 28
        %v709 = vpop.permute.xlu0 %708
        %710 = vrot.lane.b32.xlu0 %v479, 28
        %v711 = vpop.permute.xlu0 %710
        %712 = vrot.lane.b32.xlu0 %v481, 28
        %v713 = vpop.permute.xlu0 %712
        %714 = vrot.lane.b32.xlu0 %v483, 28
        %v715 = vpop.permute.xlu0 %714
        %716 = vrot.lane.b32.xlu0 %v485, 28
        %v717 = vpop.permute.xlu0 %716
        %718 = vrot.lane.b32.xlu0 %v487, 28
        %v719 = vpop.permute.xlu0 %718
        %720 = vrot.lane.b32.xlu0 %v489, 28
        %v721 = vpop.permute.xlu0 %720
        %722 = vrot.lane.b32.xlu0 %v491, 28
        %v723 = vpop.permute.xlu0 %722
        %740 = vrot.lane.b32.xlu0 %v493, 32
        %v741 = vpop.permute.xlu0 %740
        %742 = vrot.lane.b32.xlu0 %v495, 32
        %v743 = vpop.permute.xlu0 %742
        %744 = vrot.lane.b32.xlu0 %v497, 32
        %v745 = vpop.permute.xlu0 %744
        %746 = vrot.lane.b32.xlu0 %v499, 32
        %v747 = vpop.permute.xlu0 %746
        %748 = vrot.lane.b32.xlu0 %v501, 32
        %v749 = vpop.permute.xlu0 %748
        %750 = vrot.lane.b32.xlu0 %v503, 32
        %v751 = vpop.permute.xlu0 %750
        %752 = vrot.lane.b32.xlu0 %v505, 32
        %v753 = vpop.permute.xlu0 %752
        %754 = vrot.lane.b32.xlu0 %v507, 32
        %v755 = vpop.permute.xlu0 %754
        %v764 = vsel %vm223, %v366, %v517
        %v765 = vsel %vm223, %v368, %v519
        %v766 = vsel %vm223, %v370, %v521
        %v767 = vsel %vm223, %v372, %v523
        %v768 = vsel %vm223, %v374, %v525
        %v769 = vsel %vm223, %v376, %v527
        %v770 = vsel %vm223, %v378, %v529
        %v771 = vsel %vm223, %v380, %v531
        %v772 = vsel %vm279, %v764, %v549
        %v773 = vsel %vm279, %v765, %v551
        %v774 = vsel %vm279, %v766, %v553
        %v775 = vsel %vm279, %v767, %v555
        %v776 = vsel %vm279, %v768, %v557
        %v777 = vsel %vm279, %v769, %v559
        %v778 = vsel %vm279, %v770, %v561
        %v779 = vsel %vm279, %v771, %v563
        %vm780 = vcmask 97280
        %v781 = vsel %vm780, %v772, %v581
        %v782 = vsel %vm780, %v773, %v583
        %v783 = vsel %vm780, %v774, %v585
        %v784 = vsel %vm780, %v775, %v587
        %v785 = vsel %vm780, %v776, %v589
        %v786 = vsel %vm780, %v777, %v591
        %v787 = vsel %vm780, %v778, %v593
        %v788 = vsel %vm780, %v779, %v595
        %vm789 = vcmask 130048
        %v790 = vsel %vm789, %v781, %v613
        %v791 = vsel %vm789, %v782, %v615
        %v792 = vsel %vm789, %v783, %v617
        %v793 = vsel %vm789, %v784, %v619
        %v794 = vsel %vm789, %v785, %v621
        %v795 = vsel %vm789, %v786, %v623
        %v796 = vsel %vm789, %v787, %v625
        %v797 = vsel %vm789, %v788, %v627
        %vm798 = vcmask 162816
        %v799 = vsel %vm798, %v790, %v645
        %v800 = vsel %vm798, %v791, %v647
        %v801 = vsel %vm798, %v792, %v649
        %v802 = vsel %vm798, %v793, %v651
        %v803 = vsel %vm798, %v794, %v653
        %v804 = vsel %vm798, %v795, %v655
        %v805 = vsel %vm798, %v796, %v657
        %v806 = vsel %vm798, %v797, %v659
        %vm807 = vcmask 195584
        %v808 = vsel %vm807, %v799, %v677
        %v809 = vsel %vm807, %v800, %v679
        %v810 = vsel %vm807, %v801, %v681
        %v811 = vsel %vm807, %v802, %v683
        %v812 = vsel %vm807, %v803, %v685
        %v813 = vsel %vm807, %v804, %v687
        %v814 = vsel %vm807, %v805, %v689
        %v815 = vsel %vm807, %v806, %v691
        %vm816 = vcmask 228352
        %v817 = vsel %vm816, %v808, %v709
        %v818 = vsel %vm816, %v809, %v711
        %v819 = vsel %vm816, %v810, %v713
        %v820 = vsel %vm816, %v811, %v715
        %v821 = vsel %vm816, %v812, %v717
        %v822 = vsel %vm816, %v813, %v719
        %v823 = vsel %vm816, %v814, %v721
        %v824 = vsel %vm816, %v815, %v723
        %vm825 = vcmask 261120
        %v826 = vsel %vm825, %v817, %v741
        %v827 = vsel %vm825, %v818, %v743
        %v828 = vsel %vm825, %v819, %v745
        %v829 = vsel %vm825, %v820, %v747
        %v830 = vsel %vm825, %v821, %v749
        %v831 = vsel %vm825, %v822, %v751
        %v832 = vsel %vm825, %v823, %v753
        %v833 = vsel %vm825, %v824, %v755
        %v834 = vld [vmem:[%s1] sm:$0xff]
        %v835 = vld [vmem:[%s1 + $0x8] sm:$0xff]
        %v836 = vld [vmem:[%s1 + $0x10] sm:$0xff]
        %v837 = vld [vmem:[%s1 + $0x18] sm:$0xff]
        %v838 = vld [vmem:[%s1 + $0x20] sm:$0xf]
        %v839 = vld [vmem:[%s2] sm:$0x1]
        %v841 = vlaneseq
        %v842 = vshrl.u32 %v841, 7
        %v843 = vsub.s32 0, %v842
        %v844 = vrot.slane %v839, %v843
        %vm846 = vcmask 293888
        %v848 = vsel %vm846, %v826, 0
        %v851 = vsel %vm846, %v827, 0
        %v854 = vsel %vm846, %v828, 0
        %v857 = vsel %vm846, %v829, 0
        %v860 = vsel %vm846, %v830, 0
        %v863 = vsel %vm846, %v831, 0
        %v866 = vsel %vm846, %v832, 0
        %v869 = vsel %vm846, %v833, 0
        %vm871 = vcmask 1043456
        %v873 = vsel %vm871, %v838, 0
        %875 = vmatprep.subr.mxu0 0.0
        %876 = vmatpush1.msra.mxu0 %v834
        %877 = vmatprep.subr.mxu0 0.0
        %878 = vmatpush1.msra.mxu0 %v835
        %879 = vmatprep.subr.mxu0 0.0
        %880 = vmatpush1.msra.mxu0 %v836
        %881 = vmatprep.subr.mxu0 0.0
        %882 = vmatpush1.msra.mxu0 %v837
        %883 = vmatprep.subr.mxu0 0.0
        %884 = vmatpush1.msra.mxu0 %v873
        %885 = vmatprep.subr.mxu0 0.0
        %886 = vmatpush1.msra.mxu0 0.0
        %887 = vmatprep.subr.mxu0 0.0
        %888 = vmatpush1.msra.mxu0 0.0
        %889 = vmatprep.subr.mxu0 0.0
        %890 = vmatpush1.msra.mxu0 0.0
        %891 = vmatprep.subr.mxu0 0.0
        %892 = vmatpush1.msra.mxu0 0.0
        %893 = vmatprep.subr.mxu0 0.0
        %894 = vmatpush1.msra.mxu0 0.0
        %895 = vmatprep.subr.mxu0 0.0
        %896 = vmatpush1.msra.mxu0 0.0
        %897 = vmatprep.subr.mxu0 0.0
        %898 = vmatpush1.msra.mxu0 0.0
        %899 = vmatprep.subr.mxu0 0.0
        %900 = vmatpush1.msra.mxu0 0.0
        %901 = vmatprep.subr.mxu0 0.0
        %902 = vmatpush1.msra.mxu0 0.0
        %903 = vmatprep.subr.mxu0 0.0
        %904 = vmatpush1.msra.mxu0 0.0
        %905 = vmatprep.subr.mxu0 0.0
        %906 = vmatpush1.msra.mxu0 0.0
        %907 = vmatprep.subr.mxu0 0.0
        %908 = vmatpush1.msra.mxu0 0.0
        %909 = vmatprep.subr.mxu0 0.0
        %910 = vmatpush1.msra.mxu0 0.0
        %911 = vmatprep.subr.mxu0 0.0
        %912 = vmatpush1.msra.mxu0 0.0
        %913 = vmatprep.subr.mxu0 0.0
        %914 = vmatpush1.msra.mxu0 0.0
        %915 = vmatprep.subr.mxu0 0.0
        %916 = vmatpush1.msra.mxu0 0.0
        %917 = vmatprep.subr.mxu0 0.0
        %918 = vmatpush1.msra.mxu0 0.0
        %919 = vmatprep.subr.mxu0 0.0
        %920 = vmatpush1.msra.mxu0 0.0
        %921 = vmatprep.subr.mxu0 0.0
        %922 = vmatpush1.msra.mxu0 0.0
        %923 = vmatprep.subr.mxu0 0.0
        %924 = vmatpush1.msra.mxu0 0.0
        %925 = vmatprep.subr.mxu0 0.0
        %926 = vmatpush1.msra.mxu0 0.0
        %927 = vmatprep.subr.mxu0 0.0
        %928 = vmatpush1.msra.mxu0 0.0
        %929 = vmatprep.subr.mxu0 0.0
        %930 = vmatpush1.msra.mxu0 0.0
        %931 = vmatprep.subr.mxu0 0.0
        %932 = vmatpush1.msra.mxu0 0.0
        %933 = vmatprep.subr.mxu0 0.0
        %934 = vmatpush1.msra.mxu0 0.0
        %935 = vmatprep.subr.mxu0 0.0
        %936 = vmatpush1.msra.mxu0 0.0
        %937 = vmatprep.subr.mxu0 0.0
        %938 = vmatpush1.msra.mxu0 0.0
        %939 = vmatprep.mubr.f32.mxu0 0.0
        %940 = vmatmul.mubr.f32.gmra.mrb[0].mxu0 %v848
        %v941 = vpop.f32.mrb[0].mxu0
        %v942 = vadd.f32 %v844, %v941
        %v943 = vpop.f32.mrb[0].mxu0
        %944 = vmatprep.mubr.f32.mxu0 0.0
        %945 = vmatmul.mubr.f32.gmra.mrb[0].mxu0 %v851
        %v946 = vpop.f32.mrb[0].mxu0
        %v947 = vadd.f32 %v844, %v946
        %v948 = vpop.f32.mrb[0].mxu0
        %949 = vmatprep.mubr.f32.mxu0 0.0
        %950 = vmatmul.mubr.f32.gmra.mrb[0].mxu0 %v854
        %v951 = vpop.f32.mrb[0].mxu0
        %v952 = vadd.f32 %v844, %v951
        %v953 = vpop.f32.mrb[0].mxu0
        %954 = vmatprep.mubr.f32.mxu0 0.0
        %955 = vmatmul.mubr.f32.gmra.mrb[0].mxu0 %v857
        %v956 = vpop.f32.mrb[0].mxu0
        %v957 = vadd.f32 %v844, %v956
        %v958 = vpop.f32.mrb[0].mxu0
        %959 = vmatprep.mubr.f32.mxu0 0.0
        %960 = vmatmul.mubr.f32.gmra.mrb[0].mxu0 %v860
        %v961 = vpop.f32.mrb[0].mxu0
        %v962 = vadd.f32 %v844, %v961
        %v963 = vpop.f32.mrb[0].mxu0
        %964 = vmatprep.mubr.f32.mxu0 0.0
        %965 = vmatmul.mubr.f32.gmra.mrb[0].mxu0 %v863
        %v966 = vpop.f32.mrb[0].mxu0
        %v967 = vadd.f32 %v844, %v966
        %v968 = vpop.f32.mrb[0].mxu0
        %969 = vmatprep.mubr.f32.mxu0 0.0
        %970 = vmatmul.mubr.f32.gmra.mrb[0].mxu0 %v866
        %v971 = vpop.f32.mrb[0].mxu0
        %v972 = vadd.f32 %v844, %v971
        %v973 = vpop.f32.mrb[0].mxu0
        %974 = vmatprep.mubr.f32.mxu0 0.0
        %975 = vmatmul.mubr.f32.gmra.mrb[0].mxu0 %v869
        %v976 = vpop.f32.mrb[0].mxu0
        %v977 = vadd.f32 %v844, %v976
        %v978 = vpop.f32.mrb[0].mxu0
        %979 = vdwg.mxu0
        %v980 = vmax.f32 %v942, 0.0
        %v981 = vmax.f32 %v947, 0.0
        %v982 = vmax.f32 %v952, 0.0
        %v983 = vmax.f32 %v957, 0.0
        %v984 = vmax.f32 %v962, 0.0
        %v985 = vmax.f32 %v967, 0.0
        %v986 = vmax.f32 %v972, 0.0
        %v987 = vmax.f32 %v977, 0.0
        %s988 = scalar_lea.vmem [#allocation3], 16
        %989 = vst.msk [vmem:[%s988 + $0x1] sm:$0xff] %vm279, %v980
        %990 = vst.msk [vmem:[%s988 + $0x11] sm:$0xff] %vm279, %v981
        %991 = vst.msk [vmem:[%s988 + $0x21] sm:$0xff] %vm279, %v982
        %992 = vst.msk [vmem:[%s988 + $0x31] sm:$0xff] %vm279, %v983
        %993 = vst.msk [vmem:[%s988 + $0x41] sm:$0xff] %vm279, %v984
        %994 = vst.msk [vmem:[%s988 + $0x51] sm:$0xff] %vm279, %v985
        %995 = vst.msk [vmem:[%s988 + $0x61] sm:$0xff] %vm279, %v986
        %996 = vst.msk [vmem:[%s988 + $0x71] sm:$0xff] %vm279, %v987
        %v997 = vld [vmem:[#allocation3] ss:$2 sm:$0xf]
        %s998 = scalar_lea.vmem [#allocation3], 32
        %v999 = vld [vmem:[%s998] ss:$2 sm:$0xf]
        %s1000 = scalar_lea.vmem [#allocation3], 64
        %v1001 = vld [vmem:[%s1000] ss:$2 sm:$0xf]
        %s1002 = scalar_lea.vmem [#allocation3], 96
        %v1003 = vld [vmem:[%s1002] ss:$2 sm:$0xf]
        %s1004 = scalar_lea.vmem [#allocation3], 1
        %v1005 = vld [vmem:[%s1004] ss:$2 sm:$0xf]
        %s1006 = scalar_lea.vmem [#allocation3], 33
        %v1007 = vld [vmem:[%s1006] ss:$2 sm:$0xf]
        %s1008 = scalar_lea.vmem [#allocation3], 65
        %v1009 = vld [vmem:[%s1008] ss:$2 sm:$0xf]
        %s1010 = scalar_lea.vmem [#allocation3], 97
        %v1011 = vld [vmem:[%s1010] ss:$2 sm:$0xf]
        %s1012 = scalar_lea.vmem [#allocation3], 2
        %v1013 = vld [vmem:[%s1012] ss:$2 sm:$0xf]
        %s1014 = scalar_lea.vmem [#allocation3], 34
        %v1015 = vld [vmem:[%s1014] ss:$2 sm:$0xf]
        %s1016 = scalar_lea.vmem [#allocation3], 66
        %v1017 = vld [vmem:[%s1016] ss:$2 sm:$0xf]
        %s1018 = scalar_lea.vmem [#allocation3], 98
        %v1019 = vld [vmem:[%s1018] ss:$2 sm:$0xf]
        %v1020 = vld [vmem:[%s988] ss:$2 sm:$0xf]
        %s1021 = scalar_lea.vmem %s988, 32 [#allocation3]
        %v1022 = vld [vmem:[%s1021] ss:$2 sm:$0xf]
        %s1023 = scalar_lea.vmem %s988, 64 [#allocation3]
        %v1024 = vld [vmem:[%s1023] ss:$2 sm:$0xf]
        %s1025 = scalar_lea.vmem %s988, 96 [#allocation3]
        %v1026 = vld [vmem:[%s1025] ss:$2 sm:$0xf]
        %s1027 = scalar_lea.vmem %s988, 1 [#allocation3]
        %v1028 = vld [vmem:[%s1027] ss:$2 sm:$0xf]
        %s1029 = scalar_lea.vmem %s988, 33 [#allocation3]
        %v1030 = vld [vmem:[%s1029] ss:$2 sm:$0xf]
        %s1031 = scalar_lea.vmem %s988, 65 [#allocation3]
        %v1032 = vld [vmem:[%s1031] ss:$2 sm:$0xf]
        %s1033 = scalar_lea.vmem %s988, 97 [#allocation3]
        %v1034 = vld [vmem:[%s1033] ss:$2 sm:$0xf]
        %s1035 = scalar_lea.vmem %s988, 2 [#allocation3]
        %v1036 = vld [vmem:[%s1035] ss:$2 sm:$0xf]
        %s1037 = scalar_lea.vmem %s988, 34 [#allocation3]
        %v1038 = vld [vmem:[%s1037] ss:$2 sm:$0xf]
        %s1039 = scalar_lea.vmem %s988, 66 [#allocation3]
        %v1040 = vld [vmem:[%s1039] ss:$2 sm:$0xf]
        %s1041 = scalar_lea.vmem %s988, 98 [#allocation3]
        %v1042 = vld [vmem:[%s1041] ss:$2 sm:$0xf]
        %s1043 = scalar_lea.vmem [#allocation3], 32
        %v1044 = vld [vmem:[%s1043] ss:$2 sm:$0xf]
        %s1045 = scalar_lea.vmem %s1043, 32 [#allocation3]
        %v1046 = vld [vmem:[%s1045] ss:$2 sm:$0xf]
        %s1047 = scalar_lea.vmem %s1043, 64 [#allocation3]
        %v1048 = vld [vmem:[%s1047] ss:$2 sm:$0xf]
        %s1049 = scalar_lea.vmem %s1043, 96 [#allocation3]
        %v1050 = vld [vmem:[%s1049] ss:$2 sm:$0xf]
        %s1051 = scalar_lea.vmem %s1043, 1 [#allocation3]
        %v1052 = vld [vmem:[%s1051] ss:$2 sm:$0xf]
        %s1053 = scalar_lea.vmem %s1043, 33 [#allocation3]
        %v1054 = vld [vmem:[%s1053] ss:$2 sm:$0xf]
        %s1055 = scalar_lea.vmem %s1043, 65 [#allocation3]
        %v1056 = vld [vmem:[%s1055] ss:$2 sm:$0xf]
        %s1057 = scalar_lea.vmem %s1043, 97 [#allocation3]
        %v1058 = vld [vmem:[%s1057] ss:$2 sm:$0xf]
        %s1059 = scalar_lea.vmem %s1043, 2 [#allocation3]
        %v1060 = vld [vmem:[%s1059] ss:$2 sm:$0xf]
        %s1061 = scalar_lea.vmem %s1043, 34 [#allocation3]
        %v1062 = vld [vmem:[%s1061] ss:$2 sm:$0xf]
        %s1063 = scalar_lea.vmem %s1043, 66 [#allocation3]
        %v1064 = vld [vmem:[%s1063] ss:$2 sm:$0xf]
        %s1065 = scalar_lea.vmem %s1043, 98 [#allocation3]
        %v1066 = vld [vmem:[%s1065] ss:$2 sm:$0xf]
        %1071 = vrot.lane.b32.xlu0 %v1005, 8
        %v1072 = vpop.permute.xlu0 %1071
        %1073 = vrot.lane.b32.xlu0 %v1007, 8
        %v1074 = vpop.permute.xlu0 %1073
        %1075 = vrot.lane.b32.xlu0 %v1009, 8
        %v1076 = vpop.permute.xlu0 %1075
        %1077 = vrot.lane.b32.xlu0 %v1011, 8
        %v1078 = vpop.permute.xlu0 %1077
        %1087 = vrot.lane.b32.xlu0 %v1013, 16
        %v1088 = vpop.permute.xlu0 %1087
        %1089 = vrot.lane.b32.xlu0 %v1015, 16
        %v1090 = vpop.permute.xlu0 %1089
        %1091 = vrot.lane.b32.xlu0 %v1017, 16
        %v1092 = vpop.permute.xlu0 %1091
        %1093 = vrot.lane.b32.xlu0 %v1019, 16
        %v1094 = vpop.permute.xlu0 %1093
        %1103 = vrot.lane.b32.xlu0 %v1020, 24
        %v1104 = vpop.permute.xlu0 %1103
        %1105 = vrot.lane.b32.xlu0 %v1022, 24
        %v1106 = vpop.permute.xlu0 %1105
        %1107 = vrot.lane.b32.xlu0 %v1024, 24
        %v1108 = vpop.permute.xlu0 %1107
        %1109 = vrot.lane.b32.xlu0 %v1026, 24
        %v1110 = vpop.permute.xlu0 %1109
        %1119 = vrot.lane.b32.xlu0 %v1028, 32
        %v1120 = vpop.permute.xlu0 %1119
        %1121 = vrot.lane.b32.xlu0 %v1030, 32
        %v1122 = vpop.permute.xlu0 %1121
        %1123 = vrot.lane.b32.xlu0 %v1032, 32
        %v1124 = vpop.permute.xlu0 %1123
        %1125 = vrot.lane.b32.xlu0 %v1034, 32
        %v1126 = vpop.permute.xlu0 %1125
        %1135 = vrot.lane.b32.xlu0 %v1036, 40
        %v1136 = vpop.permute.xlu0 %1135
        %1137 = vrot.lane.b32.xlu0 %v1038, 40
        %v1138 = vpop.permute.xlu0 %1137
        %1139 = vrot.lane.b32.xlu0 %v1040, 40
        %v1140 = vpop.permute.xlu0 %1139
        %1141 = vrot.lane.b32.xlu0 %v1042, 40
        %v1142 = vpop.permute.xlu0 %1141
        %1151 = vrot.lane.b32.xlu0 %v1044, 48
        %v1152 = vpop.permute.xlu0 %1151
        %1153 = vrot.lane.b32.xlu0 %v1046, 48
        %v1154 = vpop.permute.xlu0 %1153
        %1155 = vrot.lane.b32.xlu0 %v1048, 48
        %v1156 = vpop.permute.xlu0 %1155
        %1157 = vrot.lane.b32.xlu0 %v1050, 48
        %v1158 = vpop.permute.xlu0 %1157
        %1167 = vrot.lane.b32.xlu0 %v1052, 56
        %v1168 = vpop.permute.xlu0 %1167
        %1169 = vrot.lane.b32.xlu0 %v1054, 56
        %v1170 = vpop.permute.xlu0 %1169
        %1171 = vrot.lane.b32.xlu0 %v1056, 56
        %v1172 = vpop.permute.xlu0 %1171
        %1173 = vrot.lane.b32.xlu0 %v1058, 56
        %v1174 = vpop.permute.xlu0 %1173
        %1183 = vrot.lane.b32.xlu0 %v1060, 64
        %v1184 = vpop.permute.xlu0 %1183
        %1185 = vrot.lane.b32.xlu0 %v1062, 64
        %v1186 = vpop.permute.xlu0 %1185
        %1187 = vrot.lane.b32.xlu0 %v1064, 64
        %v1188 = vpop.permute.xlu0 %1187
        %1189 = vrot.lane.b32.xlu0 %v1066, 64
        %v1190 = vpop.permute.xlu0 %1189
        %v1195 = vsel %vm279, %v997, %v1072
        %v1196 = vsel %vm279, %v999, %v1074
        %v1197 = vsel %vm279, %v1001, %v1076
        %v1198 = vsel %vm279, %v1003, %v1078
        %v1199 = vsel %vm789, %v1195, %v1088
        %v1200 = vsel %vm789, %v1196, %v1090
        %v1201 = vsel %vm789, %v1197, %v1092
        %v1202 = vsel %vm789, %v1198, %v1094
        %v1203 = vsel %vm807, %v1199, %v1104
        %v1204 = vsel %vm807, %v1200, %v1106
        %v1205 = vsel %vm807, %v1201, %v1108
        %v1206 = vsel %vm807, %v1202, %v1110
        %v1207 = vsel %vm825, %v1203, %v1120
        %v1208 = vsel %vm825, %v1204, %v1122
        %v1209 = vsel %vm825, %v1205, %v1124
        %v1210 = vsel %vm825, %v1206, %v1126
        %vm1211 = vcmask 326656
        %v1212 = vsel %vm1211, %v1207, %v1136
        %v1213 = vsel %vm1211, %v1208, %v1138
        %v1214 = vsel %vm1211, %v1209, %v1140
        %v1215 = vsel %vm1211, %v1210, %v1142
        %vm1216 = vcmask 392192
        %v1217 = vsel %vm1216, %v1212, %v1152
        %v1218 = vsel %vm1216, %v1213, %v1154
        %v1219 = vsel %vm1216, %v1214, %v1156
        %v1220 = vsel %vm1216, %v1215, %v1158
        %vm1221 = vcmask 457728
        %v1222 = vsel %vm1221, %v1217, %v1168
        %v1223 = vsel %vm1221, %v1218, %v1170
        %v1224 = vsel %vm1221, %v1219, %v1172
        %v1225 = vsel %vm1221, %v1220, %v1174
        %vm1226 = vcmask 523264
        %v1227 = vsel %vm1226, %v1222, %v1184
        %v1228 = vsel %vm1226, %v1223, %v1186
        %v1229 = vsel %vm1226, %v1224, %v1188
        %v1230 = vsel %vm1226, %v1225, %v1190
        %v1231 = vld [vmem:[%s3] sm:$0xff]
        %v1232 = vld [vmem:[%s3 + $0x8] sm:$0xff]
        %v1233 = vld [vmem:[%s3 + $0x10] sm:$0xff]
        %v1234 = vld [vmem:[%s3 + $0x18] sm:$0xff]
        %v1235 = vld [vmem:[%s3 + $0x20] sm:$0xff]
        %v1236 = vld [vmem:[%s3 + $0x28] sm:$0xff]
        %v1237 = vld [vmem:[%s3 + $0x30] sm:$0xff]
        %v1238 = vld [vmem:[%s3 + $0x38] sm:$0xff]
        %v1239 = vld [vmem:[%s3 + $0x40] sm:$0xff]
        %v1240 = vld [vmem:[%s4] sm:$0x1]
        %v1242 = vlaneseq
        %v1243 = vshrl.u32 %v1242, 7
        %v1244 = vsub.s32 0, %v1243
        %v1245 = vrot.slane %v1240, %v1244
        %v1251 = vcombine.low %v1227, %v1228
        %v1252 = vcombine.low %v1229, %v1230
        %vm1253 = vcmask 588800
        %v1254 = vsel %vm1253, %v1251, 0
        %v1256 = vsel %vm1253, %v1252, 0
        %1258 = vmatprep.subr.mxu0 0.0
        %1259 = vmatpush1.msra.mxu0 %v1231
        %1260 = vmatprep.subr.mxu0 0.0
        %1261 = vmatpush1.msra.mxu0 %v1232
        %1262 = vmatprep.subr.mxu0 0.0
        %1263 = vmatpush1.msra.mxu0 %v1233
        %1264 = vmatprep.subr.mxu0 0.0
        %1265 = vmatpush1.msra.mxu0 %v1234
        %1266 = vmatprep.subr.mxu0 0.0
        %1267 = vmatpush1.msra.mxu0 %v1235
        %1268 = vmatprep.subr.mxu0 0.0
        %1269 = vmatpush1.msra.mxu0 %v1236
        %1270 = vmatprep.subr.mxu0 0.0
        %1271 = vmatpush1.msra.mxu0 %v1237
        %1272 = vmatprep.subr.mxu0 0.0
        %1273 = vmatpush1.msra.mxu0 %v1238
        %1274 = vmatprep.subr.mxu0 0.0
        %1275 = vmatpush1.msra.mxu0 %v1239
        %1276 = vmatprep.subr.mxu0 0.0
        %1277 = vmatpush1.msra.mxu0 0.0
        %1278 = vmatprep.subr.mxu0 0.0
        %1279 = vmatpush1.msra.mxu0 0.0
        %1280 = vmatprep.subr.mxu0 0.0
        %1281 = vmatpush1.msra.mxu0 0.0
        %1282 = vmatprep.subr.mxu0 0.0
        %1283 = vmatpush1.msra.mxu0 0.0
        %1284 = vmatprep.subr.mxu0 0.0
        %1285 = vmatpush1.msra.mxu0 0.0
        %1286 = vmatprep.subr.mxu0 0.0
        %1287 = vmatpush1.msra.mxu0 0.0
        %1288 = vmatprep.subr.mxu0 0.0
        %1289 = vmatpush1.msra.mxu0 0.0
        %1290 = vmatprep.subr.mxu0 0.0
        %1291 = vmatpush1.msra.mxu0 0.0
        %1292 = vmatprep.subr.mxu0 0.0
        %1293 = vmatpush1.msra.mxu0 0.0
        %1294 = vmatprep.subr.mxu0 0.0
        %1295 = vmatpush1.msra.mxu0 0.0
        %1296 = vmatprep.subr.mxu0 0.0
        %1297 = vmatpush1.msra.mxu0 0.0
        %1298 = vmatprep.subr.mxu0 0.0
        %1299 = vmatpush1.msra.mxu0 0.0
        %1300 = vmatprep.subr.mxu0 0.0
        %1301 = vmatpush1.msra.mxu0 0.0
        %1302 = vmatprep.subr.mxu0 0.0
        %1303 = vmatpush1.msra.mxu0 0.0
        %1304 = vmatprep.subr.mxu0 0.0
        %1305 = vmatpush1.msra.mxu0 0.0
        %1306 = vmatprep.subr.mxu0 0.0
        %1307 = vmatpush1.msra.mxu0 0.0
        %1308 = vmatprep.subr.mxu0 0.0
        %1309 = vmatpush1.msra.mxu0 0.0
        %1310 = vmatprep.subr.mxu0 0.0
        %1311 = vmatpush1.msra.mxu0 0.0
        %1312 = vmatprep.subr.mxu0 0.0
        %1313 = vmatpush1.msra.mxu0 0.0
        %1314 = vmatprep.subr.mxu0 0.0
        %1315 = vmatpush1.msra.mxu0 0.0
        %1316 = vmatprep.subr.mxu0 0.0
        %1317 = vmatpush1.msra.mxu0 0.0
        %1318 = vmatprep.subr.mxu0 0.0
        %1319 = vmatpush1.msra.mxu0 0.0
        %1320 = vmatprep.subr.mxu0 0.0
        %1321 = vmatpush1.msra.mxu0 0.0
        %1322 = vmatprep.mubr.f32.mxu0 0.0
        %1323 = vmatmul.mubr.f32.gmra.mrb[0].mxu0 %v1254
        %v1324 = vpop.f32.mrb[0].mxu0
        %v1325 = vadd.f32 %v1245, %v1324
        %v1326 = vpop.f32.mrb[0].mxu0
        %1327 = vmatprep.mubr.f32.mxu0 0.0
        %1328 = vmatmul.mubr.f32.gmra.mrb[0].mxu0 %v1256
        %v1329 = vpop.f32.mrb[0].mxu0
        %v1330 = vadd.f32 %v1245, %v1329
        %v1331 = vpop.f32.mrb[0].mxu0
        %1332 = vdwg.mxu0
        %v1333 = vmax.f32 %v1325, 0.0
        %v1334 = vmax.f32 %v1330, 0.0
        %1335 = vst.msk [vmem:[%s217] sm:$0xff] %vm789, %v1333
        %1336 = vst.msk [vmem:[%s217 + $0x8] sm:$0xff] %vm789, %v1334
        %s1337 = sand.u32 %s137, 1
        %s1338 = scalar_lea.sflag [#allocation5], %s1337
        %s1339 = sand.u32 %s137, 1
        %s1340 = smul.addr %s1339, 16
        %s1341 = scalar_lea.vmem [#allocation4], %s1340
        // Predicated region
        $region41: #{conv2d_model_forward.1} parent=39 // pred_check
          %p1342 = pneg %p147
        $region42: #{conv2d_model_forward.1} parent=39 // pred_check_branch
          %1344 = sbr.rel (%p1342) target = $region44
        $region43: #{conv2d_model_forward.1} parent=39 // pred_region
          %s1346 = ssub.s32 256, 256
          %1347 = vsyncadd %s1338, %s1346
          %s1348 = smul.addr %s19, 2
          %s1349 = smul.addr %s1348, 128
          %s1350 = scalar_lea.hbm %s5, %s1349
          %s1351 = sshll.u32 %s1341, 4
          %s1352 = int_to_ptr.vmem [resolvable:$true] %s1351
          %1357 = dma.vmem_to_hbm [thread:$0]  %s1352, 256, %s1350, %s1338, 128, 128, 8
        $region44: #{conv2d_model_forward.1} parent=39 // pred_fallthru
          _
      $region40: #{conv2d_model_forward.1} parent=5 // pred_fallthru
        _
      %p1358 = scmp.le.s32.totalorder 2, %s14
      // Predicated region
      $region45: #{conv2d_model_forward.1} parent=5 // pred_check
        %p1359 = pneg %p1358
      $region46: #{conv2d_model_forward.1} parent=5 // pred_check_branch
        %1361 = sbr.rel (%p1359) target = $region48
      $region47: #{conv2d_model_forward.1} parent=5 // pred_region
        %s1362 = ssub.s32 %s14, 2
        // Predicated region
        $region49: #{conv2d_model_forward.1} parent=47 // pred_check
          %p1363 = pneg %p153
        $region50: #{conv2d_model_forward.1} parent=47 // pred_check_branch
          %1365 = sbr.rel (%p1363) target = $region52
        $region51: #{conv2d_model_forward.1} parent=47 // pred_region
          %s1366 = sand.u32 %s138, 1
          %s1367 = scalar_lea.sflag [#allocation5], %s1366
          %s1368 = sand.u32 %s138, 1
          %s1369 = smul.addr %s1368, 16
          %s1370 = scalar_lea.vmem [#allocation4], %s1369
          %1371 = dma.done %s1367, 256
        $region52: #{conv2d_model_forward.1} parent=47 // pred_fallthru
          _
      $region48: #{conv2d_model_forward.1} parent=5 // pred_fallthru
        _
    $region6: #{conv2d_model_forward.1} parent=1 // loop_footer
      %s18 = sadd.s32 1, %s14
    $region7: #{conv2d_model_forward.1} parent=1 // loop_footer_branch
      %13 = sbr.rel target = $region3
    $region8: #{conv2d_model_forward.1} parent=1 // loop_exit
      _
    %1372 = vsyncpa [#allocation5], 1
    %s1373 = scalar_lea.sflag [#allocation5], 1
    %1374 = vsyncpa %s1373, 1

</llo_original>
